<compile_context>
chip_gen: v5e
topology: v5e:2x2
jax: 0.10.0
libtpu: 0.0.40
codegen_flags: <defaults>
</compile_context>

<pallas_src>
import functools

import jax
import jax.numpy as jnp
from jax import lax
from jax.experimental import pallas as pl
from jax.experimental.pallas import tpu as pltpu


DILATIONS = (1, 3, 9)


def _elu(v):
    # ELU(alpha=1): v if v > 0 else exp(v) - 1  (min() avoids exp overflow)
    return jnp.where(v > 0, v, jnp.exp(jnp.minimum(v, 0.0)) - 1.0)


# -----------------------------------------------------------------------------
# Kernel: one grid step == one batch element; whole EncBlock stays on-chip.
# -----------------------------------------------------------------------------
def _encblock_kernel(x_ref, w3_ref, w1_ref, bres_ref, wf_ref, bf_ref, out_ref,
                     *, stride, dilations):
    """Packed operands (weights pre-cast to bf16, biases f32):
      x_ref    (1, C, T)    input slab for this batch element
      w3_ref   (R, C, 3C)   ResUnit conv_in weights, taps stacked along Cin
      w1_ref   (2R, C, C)   [conv_out_0, conv_sc_0, conv_out_1, conv_sc_1, ...]
      bres_ref (C, 3R)      bias columns [in_0, out_0, sc_0, in_1, ...]
      wf_ref   (2C, K*C)    final conv weight, K = 2*stride taps stacked
      bf_ref   (2C, 1)      final conv bias
      out_ref  (1, 2C, Tout)
    """
    c = x_ref.shape[1]
    t = x_ref.shape[2]
    t_out = out_ref.shape[2]

    # Hoisted once per grid step (JAX does not CSE iota/broadcast_in_dim).
    col = lax.broadcasted_iota(jnp.int32, (c, t), 1)

    def shift_right(v, s):
        """f32 (C,T) -> bf16 (C,T): out[:, u] = v[:, u - s], zero for u < s
        (the causal left pad).  Lane rotation runs on the XLU, the mask on the
        VPU -- no MXU work and no (T,T) constants."""
        if s == 0:
            return v.astype(jnp.bfloat16)
        rolled = pltpu.roll(v, s, axis=1)
        return jnp.where(col >= s, rolled, 0.0).astype(jnp.bfloat16)

    def mm(a, b):
        return jnp.dot(a, b, preferred_element_type=jnp.float32)

    x = x_ref[0].astype(jnp.float32)                      # (C, T) f32

    # --- three residual units ------------------------------------------------
    for i, d in enumerate(dilations):
        xb = shift_right(x, 0)                            # bf16 copy of x
        # conv_in (k=3, dilation d): 3 shifted copies stacked along channels
        # -> one MXU matmul with contraction width 3C.
        xs3 = jnp.concatenate(
            [shift_right(x, 2 * d), shift_right(x, d), xb], axis=0)
        y = _elu(mm(w3_ref[i], xs3) + bres_ref[:, 3 * i:3 * i + 1])
        # conv_out (k=1)
        y = _elu(mm(w1_ref[2 * i], y.astype(jnp.bfloat16))
                 + bres_ref[:, 3 * i + 1:3 * i + 2])
        # conv_shortcuts (k=1)
        xs = _elu(mm(w1_ref[2 * i + 1], xb) + bres_ref[:, 3 * i + 2:3 * i + 3])
        x = xs + y                                        # residual sum (f32)

    # --- ELU -> Pad(2*stride-1, 0) -> Conv1d(k=2*stride, stride) --------------
    k = 2 * stride
    h = _elu(x)
    hstack = jnp.concatenate([shift_right(h, k - 1 - j) for j in range(k)],
                             axis=0)                      # (K*C, T) bf16
    full = mm(wf_ref[...], hstack) + bf_ref[...]          # (2C, T) f32

    # Single shared stride-subsample gather: out[:, to] = full[:, to*stride].
    src = lax.broadcasted_iota(jnp.int32, (t, t_out), 0)
    dst = lax.broadcasted_iota(jnp.int32, (t, t_out), 1)
    gather = (src == dst * stride).astype(jnp.float32)    # exact 0/1 pick
    out = jnp.dot(full, gather, preferred_element_type=jnp.float32)
    out_ref[0] = out.astype(out_ref.dtype)


# -----------------------------------------------------------------------------
# Wrapper
# -----------------------------------------------------------------------------
def _stack_taps(w):
    """(Cout, Cin, K) conv weight -> (Cout, K*Cin) with tap-major blocks,
    matching the [shift (K-1)*d, ..., shift d, shift 0] stacking in-kernel."""
    cout, cin, k = w.shape
    return jnp.transpose(w, (0, 2, 1)).reshape(cout, k * cin)


def encblock_forward_pallas(x, params, *, stride, dilations=DILATIONS):
    """Fused EncBlock forward. x: (N, C, T) -> (N, 2C, (T-1)//stride + 1)."""
    n, c, t = x.shape
    n_res = len(dilations)
    w_f, b_f = params["final"]
    c_out = w_f.shape[0]
    k = 2 * stride
    t_out = (t - 1) // stride + 1

    # ---- pack the 21 tiny weight/bias tensors into 5 stacked operands -------
    w3 = jnp.stack([_stack_taps(params["res"][i][0][0]) for i in range(n_res)])
    w1 = jnp.stack([params["res"][i][j][0][:, :, 0]
                    for i in range(n_res) for j in (1, 2)])
    b_res = jnp.stack([params["res"][i][j][1]
                       for i in range(n_res) for j in range(3)], axis=1)
    wf = _stack_taps(w_f)
    bf = b_f.reshape(-1, 1)

    # bf16 matmul operands; accumulation stays f32 on the MXU.
    w3 = w3.astype(jnp.bfloat16)
    w1 = w1.astype(jnp.bfloat16)
    wf = wf.astype(jnp.bfloat16)
    b_res = b_res.astype(jnp.float32)
    bf = bf.astype(jnp.float32)

    kernel = functools.partial(_encblock_kernel, stride=stride,
                               dilations=tuple(dilations))

    return pl.pallas_call(
        kernel,
        out_shape=jax.ShapeDtypeStruct((n, c_out, t_out), x.dtype),
        grid=(n,),  # batch axis, "parallel" -> megacore sharding on v7x
        in_specs=[
            pl.BlockSpec((1, c, t), lambda b: (b, 0, 0)),
            pl.BlockSpec((n_res, c, 3 * c), lambda b: (0, 0, 0)),
            pl.BlockSpec((2 * n_res, c, c), lambda b: (0, 0, 0)),
            pl.BlockSpec((c, 3 * n_res), lambda b: (0, 0)),
            pl.BlockSpec((c_out, k * c), lambda b: (0, 0)),
            pl.BlockSpec((c_out, 1), lambda b: (0, 0)),
        ],
        out_specs=pl.BlockSpec((1, c_out, t_out), lambda b: (b, 0, 0)),
        compiler_params=pltpu.CompilerParams(
            dimension_semantics=("parallel",),
            vmem_limit_bytes=32 * 1024 * 1024),
    )(x, w3, w1, b_res, wf, bf)


# -----------------------------------------------------------------------------
# Parameters (weight_norm forward: w = g * v / ||v||, PyTorch dim=0)
# -----------------------------------------------------------------------------
def _weight_norm(v, g):
    norm = jnp.sqrt(jnp.sum(v * v, axis=(1, 2), keepdims=True))
    return g * v / norm


def init_encblock_params(key, out_channels, stride, dilations=DILATIONS):
    c = out_channels // 2
    keys = jax.random.split(key, 3 * len(dilations) + 1)
    res, idx = [], 0
    for _ in dilations:
        convs = []
        for k in (3, 1, 1):  # conv_in, conv_out, conv_shortcuts
            kv, kg, kb = jax.random.split(keys[idx], 3)
            idx += 1
            v = 0.1 * jax.random.normal(kv, (c, c, k), jnp.float32)
            g = 1.0 + 0.1 * jax.random.normal(kg, (c, 1, 1), jnp.float32)
            b = 0.1 * jax.random.normal(kb, (c,), jnp.float32)
            convs.append((_weight_norm(v, g), b))
        res.append(tuple(convs))
    kw, kb = jax.random.split(keys[-1])
    w_f = 0.1 * jax.random.normal(kw, (out_channels, c, 2 * stride), jnp.float32)
    b_f = 0.1 * jax.random.normal(kb, (out_channels,), jnp.float32)
    return {"res": res, "final": (w_f, b_f)}


# -----------------------------------------------------------------------------
# Pure-JAX reference (same math, XLA convs, HIGHEST precision)
# -----------------------------------------------------------------------------
def encblock_forward_ref(x, params, *, stride, dilations=DILATIONS):
    def conv(h, w, b, conv_stride=1, dilation=1):
        k = w.shape[2]
        pad_left = (k - 1) * dilation
        y = lax.conv_general_dilated(
            h, w, window_strides=(conv_stride,), padding=[(pad_left, 0)],
            rhs_dilation=(dilation,),
            dimension_numbers=("NCH", "OIH", "NCH"),
            precision=lax.Precision.HIGHEST)
        return y + b[None, :, None]

    h = x
    for ((w_in, b_in), (w_out, b_out), (w_sc, b_sc)), d in zip(
            params["res"], dilations):
        y = _elu(conv(h, w_in, b_in, dilation=d))
        y = _elu(conv(y, w_out, b_out))
        hs = _elu(conv(h, w_sc, b_sc))
        h = hs + y
    w_f, b_f = params["final"]
    return conv(_elu(h), w_f, b_f, conv_stride=stride)


if __name__ == "__main__":
    key = jax.random.PRNGKey(0)
    kx, kp = jax.random.split(key)

    batch, out_channels, stride, seq = 2, 32, 2, 128
    c = out_channels // 2
    x = jax.random.normal(kx, (batch, c, seq), jnp.float32)
    params = init_encblock_params(kp, out_channels, stride)

    out = encblock_forward_pallas(x, params, stride=stride)
    out = jax.block_until_ready(out)

    ref = encblock_forward_ref(x, params, stride=stride)
    assert out.shape == (batch, out_channels, seq // stride), out.shape
    max_err = float(jnp.max(jnp.abs(out - ref)))
    # Kernel uses bf16 matmul operands with f32 accumulation (deliberate MXU
    # path, per perf review); reference is all-f32 HIGHEST precision.
    assert jnp.allclose(out, ref, atol=5e-2, rtol=5e-2), f"max abs err {max_err}"
    print("KERNEL_OK")
</pallas_src>

<mosaic_0001>
module attributes {stable_mosaic.version = 11 : i64} {
  func.func @_encblock_kernel(%arg0: i32, %arg1: memref<1x16x128xf32, #tpu.memory_space<vmem>>, %arg2: memref<3x16x48xbf16, #tpu.memory_space<vmem>>, %arg3: memref<6x16x16xbf16, #tpu.memory_space<vmem>>, %arg4: memref<16x9xf32, #tpu.memory_space<vmem>>, %arg5: memref<32x64xbf16, #tpu.memory_space<vmem>>, %arg6: memref<32x1xf32, #tpu.memory_space<vmem>>, %arg7: memref<1x32x64xf32, #tpu.memory_space<vmem>>) attributes {dimension_semantics = [#tpu.dimension_semantics<parallel>], iteration_bounds = array<i64: 2>, scalar_prefetch = 0 : i64, scratch_operands = 0 : i64, tpu.core_type = #tpu.core_type<tc>, window_params = [{transform_indices = @transform_0, window_bounds = array<i64: 1, 16, 128>}, {pipeline_mode = #tpu.pipeline_mode<synchronous>, transform_indices = @transform_1, window_bounds = array<i64: 3, 16, 48>}, {pipeline_mode = #tpu.pipeline_mode<synchronous>, transform_indices = @transform_2, window_bounds = array<i64: 6, 16, 16>}, {pipeline_mode = #tpu.pipeline_mode<synchronous>, transform_indices = @transform_3, window_bounds = array<i64: 16, 9>}, {pipeline_mode = #tpu.pipeline_mode<synchronous>, transform_indices = @transform_4, window_bounds = array<i64: 32, 64>}, {pipeline_mode = #tpu.pipeline_mode<synchronous>, transform_indices = @transform_5, window_bounds = array<i64: 32, 1>}, {transform_indices = @transform_6, window_bounds = array<i64: 1, 32, 64>}]} {
    %0 = tpu.iota {dimensions = array<i32: 1>} : vector<16x128xi32>
    %c0 = arith.constant 0 : index
    %c0_0 = arith.constant 0 : index
    %c0_1 = arith.constant 0 : index
    %1 = vector.load %arg1[%c0, %c0_0, %c0_1] : memref<1x16x128xf32, #tpu.memory_space<vmem>>, vector<1x16x128xf32>
    %2 = vector.shape_cast %1 : vector<1x16x128xf32> to vector<16x128xf32>
    %3 = arith.truncf %2 : vector<16x128xf32> to vector<16x128xbf16>
    %c2_i32 = arith.constant 2 : i32
    %4 = tpu.dynamic_rotate %2 by %c2_i32 dim 1 : vector<16x128xf32>, i32 -> vector<16x128xf32>
    %c2_i32_2 = arith.constant 2 : i32
    %5 = vector.broadcast %c2_i32_2 : i32 to vector<16x128xi32>
    %6 = arith.cmpi sge, %0, %5 : vector<16x128xi32>
    %cst = arith.constant 0.000000e+00 : f32
    %7 = vector.broadcast %cst : f32 to vector<16x128xf32>
    %8 = arith.select %6, %4, %7 : vector<16x128xi1>, vector<16x128xf32>
    %9 = arith.truncf %8 : vector<16x128xf32> to vector<16x128xbf16>
    %c1_i32 = arith.constant 1 : i32
    %10 = tpu.dynamic_rotate %2 by %c1_i32 dim 1 : vector<16x128xf32>, i32 -> vector<16x128xf32>
    %c1_i32_3 = arith.constant 1 : i32
    %11 = vector.broadcast %c1_i32_3 : i32 to vector<16x128xi32>
    %12 = arith.cmpi sge, %0, %11 : vector<16x128xi32>
    %cst_4 = arith.constant 0.000000e+00 : f32
    %13 = vector.broadcast %cst_4 : f32 to vector<16x128xf32>
    %14 = arith.select %12, %10, %13 : vector<16x128xi1>, vector<16x128xf32>
    %15 = arith.truncf %14 : vector<16x128xf32> to vector<16x128xbf16>
    %16 = tpu.concatenate %9, %15, %3 in 0 : vector<16x128xbf16>, vector<16x128xbf16>, vector<16x128xbf16> -> vector<48x128xbf16>
    %c0_5 = arith.constant 0 : index
    %c0_6 = arith.constant 0 : index
    %c0_7 = arith.constant 0 : index
    %17 = vector.load %arg2[%c0_5, %c0_6, %c0_7] : memref<3x16x48xbf16, #tpu.memory_space<vmem>>, vector<1x16x48xbf16>
    %18 = vector.shape_cast %17 : vector<1x16x48xbf16> to vector<16x48xbf16>
    %cst_8 = arith.constant dense<0.000000e+00> : vector<16x128xf32>
    %19 = tpu.matmul %18, %16, %cst_8 {dimension_numbers = #tpu.dot_dimension_numbers<[1], [0], [0], [1], [0, 0, 1, 1], [], []>} : vector<16x48xbf16>, vector<48x128xbf16>, vector<16x128xf32> -> vector<16x128xf32>
    %c0_9 = arith.constant 0 : index
    %c0_10 = arith.constant 0 : index
    %20 = vector.load %arg4[%c0_9, %c0_10] : memref<16x9xf32, #tpu.memory_space<vmem>>, vector<16x1xf32>
    %21 = vector.broadcast %20 : vector<16x1xf32> to vector<16x128xf32>
    %22 = arith.addf %19, %21 : vector<16x128xf32>
    %cst_11 = arith.constant 0.000000e+00 : f32
    %23 = vector.broadcast %cst_11 : f32 to vector<16x128xf32>
    %24 = arith.cmpf ogt, %22, %23 : vector<16x128xf32>
    %cst_12 = arith.constant 0.000000e+00 : f32
    %25 = vector.broadcast %cst_12 : f32 to vector<16x128xf32>
    %26 = arith.minimumf %22, %25 : vector<16x128xf32>
    %27 = math.exp %26 : vector<16x128xf32>
    %cst_13 = arith.constant 1.000000e+00 : f32
    %28 = vector.broadcast %cst_13 : f32 to vector<16x128xf32>
    %29 = arith.subf %27, %28 : vector<16x128xf32>
    %30 = arith.select %24, %22, %29 : vector<16x128xi1>, vector<16x128xf32>
    %c0_14 = arith.constant 0 : index
    %c0_15 = arith.constant 0 : index
    %c0_16 = arith.constant 0 : index
    %31 = vector.load %arg3[%c0_14, %c0_15, %c0_16] : memref<6x16x16xbf16, #tpu.memory_space<vmem>>, vector<1x16x16xbf16>
    %32 = vector.shape_cast %31 : vector<1x16x16xbf16> to vector<16x16xbf16>
    %33 = arith.truncf %30 : vector<16x128xf32> to vector<16x128xbf16>
    %cst_17 = arith.constant dense<0.000000e+00> : vector<16x128xf32>
    %34 = tpu.matmul %32, %33, %cst_17 {dimension_numbers = #tpu.dot_dimension_numbers<[1], [0], [0], [1], [0, 0, 1, 1], [], []>} : vector<16x16xbf16>, vector<16x128xbf16>, vector<16x128xf32> -> vector<16x128xf32>
    %c0_18 = arith.constant 0 : index
    %c1 = arith.constant 1 : index
    %35 = vector.load %arg4[%c0_18, %c1] : memref<16x9xf32, #tpu.memory_space<vmem>>, vector<16x1xf32>
    %36 = vector.broadcast %35 : vector<16x1xf32> to vector<16x128xf32>
    %37 = arith.addf %34, %36 : vector<16x128xf32>
    %cst_19 = arith.constant 0.000000e+00 : f32
    %38 = vector.broadcast %cst_19 : f32 to vector<16x128xf32>
    %39 = arith.cmpf ogt, %37, %38 : vector<16x128xf32>
    %cst_20 = arith.constant 0.000000e+00 : f32
    %40 = vector.broadcast %cst_20 : f32 to vector<16x128xf32>
    %41 = arith.minimumf %37, %40 : vector<16x128xf32>
    %42 = math.exp %41 : vector<16x128xf32>
    %cst_21 = arith.constant 1.000000e+00 : f32
    %43 = vector.broadcast %cst_21 : f32 to vector<16x128xf32>
    %44 = arith.subf %42, %43 : vector<16x128xf32>
    %45 = arith.select %39, %37, %44 : vector<16x128xi1>, vector<16x128xf32>
    %c1_22 = arith.constant 1 : index
    %c0_23 = arith.constant 0 : index
    %c0_24 = arith.constant 0 : index
    %46 = vector.load %arg3[%c1_22, %c0_23, %c0_24] : memref<6x16x16xbf16, #tpu.memory_space<vmem>>, vector<1x16x16xbf16>
    %47 = vector.shape_cast %46 : vector<1x16x16xbf16> to vector<16x16xbf16>
    %cst_25 = arith.constant dense<0.000000e+00> : vector<16x128xf32>
    %48 = tpu.matmul %47, %3, %cst_25 {dimension_numbers = #tpu.dot_dimension_numbers<[1], [0], [0], [1], [0, 0, 1, 1], [], []>} : vector<16x16xbf16>, vector<16x128xbf16>, vector<16x128xf32> -> vector<16x128xf32>
    %c0_26 = arith.constant 0 : index
    %c2 = arith.constant 2 : index
    %49 = vector.load %arg4[%c0_26, %c2] : memref<16x9xf32, #tpu.memory_space<vmem>>, vector<16x1xf32>
    %50 = vector.broadcast %49 : vector<16x1xf32> to vector<16x128xf32>
    %51 = arith.addf %48, %50 : vector<16x128xf32>
    %cst_27 = arith.constant 0.000000e+00 : f32
    %52 = vector.broadcast %cst_27 : f32 to vector<16x128xf32>
    %53 = arith.cmpf ogt, %51, %52 : vector<16x128xf32>
    %cst_28 = arith.constant 0.000000e+00 : f32
    %54 = vector.broadcast %cst_28 : f32 to vector<16x128xf32>
    %55 = arith.minimumf %51, %54 : vector<16x128xf32>
    %56 = math.exp %55 : vector<16x128xf32>
    %cst_29 = arith.constant 1.000000e+00 : f32
    %57 = vector.broadcast %cst_29 : f32 to vector<16x128xf32>
    %58 = arith.subf %56, %57 : vector<16x128xf32>
    %59 = arith.select %53, %51, %58 : vector<16x128xi1>, vector<16x128xf32>
    %60 = arith.addf %59, %45 : vector<16x128xf32>
    %61 = arith.truncf %60 : vector<16x128xf32> to vector<16x128xbf16>
    %c6_i32 = arith.constant 6 : i32
    %62 = tpu.dynamic_rotate %60 by %c6_i32 dim 1 : vector<16x128xf32>, i32 -> vector<16x128xf32>
    %c6_i32_30 = arith.constant 6 : i32
    %63 = vector.broadcast %c6_i32_30 : i32 to vector<16x128xi32>
    %64 = arith.cmpi sge, %0, %63 : vector<16x128xi32>
    %cst_31 = arith.constant 0.000000e+00 : f32
    %65 = vector.broadcast %cst_31 : f32 to vector<16x128xf32>
    %66 = arith.select %64, %62, %65 : vector<16x128xi1>, vector<16x128xf32>
    %67 = arith.truncf %66 : vector<16x128xf32> to vector<16x128xbf16>
    %c3_i32 = arith.constant 3 : i32
    %68 = tpu.dynamic_rotate %60 by %c3_i32 dim 1 : vector<16x128xf32>, i32 -> vector<16x128xf32>
    %c3_i32_32 = arith.constant 3 : i32
    %69 = vector.broadcast %c3_i32_32 : i32 to vector<16x128xi32>
    %70 = arith.cmpi sge, %0, %69 : vector<16x128xi32>
    %cst_33 = arith.constant 0.000000e+00 : f32
    %71 = vector.broadcast %cst_33 : f32 to vector<16x128xf32>
    %72 = arith.select %70, %68, %71 : vector<16x128xi1>, vector<16x128xf32>
    %73 = arith.truncf %72 : vector<16x128xf32> to vector<16x128xbf16>
    %74 = tpu.concatenate %67, %73, %61 in 0 : vector<16x128xbf16>, vector<16x128xbf16>, vector<16x128xbf16> -> vector<48x128xbf16>
    %c1_34 = arith.constant 1 : index
    %c0_35 = arith.constant 0 : index
    %c0_36 = arith.constant 0 : index
    %75 = vector.load %arg2[%c1_34, %c0_35, %c0_36] : memref<3x16x48xbf16, #tpu.memory_space<vmem>>, vector<1x16x48xbf16>
    %76 = vector.shape_cast %75 : vector<1x16x48xbf16> to vector<16x48xbf16>
    %cst_37 = arith.constant dense<0.000000e+00> : vector<16x128xf32>
    %77 = tpu.matmul %76, %74, %cst_37 {dimension_numbers = #tpu.dot_dimension_numbers<[1], [0], [0], [1], [0, 0, 1, 1], [], []>} : vector<16x48xbf16>, vector<48x128xbf16>, vector<16x128xf32> -> vector<16x128xf32>
    %c0_38 = arith.constant 0 : index
    %c3 = arith.constant 3 : index
    %78 = vector.load %arg4[%c0_38, %c3] : memref<16x9xf32, #tpu.memory_space<vmem>>, vector<16x1xf32>
    %79 = vector.broadcast %78 : vector<16x1xf32> to vector<16x128xf32>
    %80 = arith.addf %77, %79 : vector<16x128xf32>
    %cst_39 = arith.constant 0.000000e+00 : f32
    %81 = vector.broadcast %cst_39 : f32 to vector<16x128xf32>
    %82 = arith.cmpf ogt, %80, %81 : vector<16x128xf32>
    %cst_40 = arith.constant 0.000000e+00 : f32
    %83 = vector.broadcast %cst_40 : f32 to vector<16x128xf32>
    %84 = arith.minimumf %80, %83 : vector<16x128xf32>
    %85 = math.exp %84 : vector<16x128xf32>
    %cst_41 = arith.constant 1.000000e+00 : f32
    %86 = vector.broadcast %cst_41 : f32 to vector<16x128xf32>
    %87 = arith.subf %85, %86 : vector<16x128xf32>
    %88 = arith.select %82, %80, %87 : vector<16x128xi1>, vector<16x128xf32>
    %c2_42 = arith.constant 2 : index
    %c0_43 = arith.constant 0 : index
    %c0_44 = arith.constant 0 : index
    %89 = vector.load %arg3[%c2_42, %c0_43, %c0_44] : memref<6x16x16xbf16, #tpu.memory_space<vmem>>, vector<1x16x16xbf16>
    %90 = vector.shape_cast %89 : vector<1x16x16xbf16> to vector<16x16xbf16>
    %91 = arith.truncf %88 : vector<16x128xf32> to vector<16x128xbf16>
    %cst_45 = arith.constant dense<0.000000e+00> : vector<16x128xf32>
    %92 = tpu.matmul %90, %91, %cst_45 {dimension_numbers = #tpu.dot_dimension_numbers<[1], [0], [0], [1], [0, 0, 1, 1], [], []>} : vector<16x16xbf16>, vector<16x128xbf16>, vector<16x128xf32> -> vector<16x128xf32>
    %c0_46 = arith.constant 0 : index
    %c4 = arith.constant 4 : index
    %93 = vector.load %arg4[%c0_46, %c4] : memref<16x9xf32, #tpu.memory_space<vmem>>, vector<16x1xf32>
    %94 = vector.broadcast %93 : vector<16x1xf32> to vector<16x128xf32>
    %95 = arith.addf %92, %94 : vector<16x128xf32>
    %cst_47 = arith.constant 0.000000e+00 : f32
    %96 = vector.broadcast %cst_47 : f32 to vector<16x128xf32>
    %97 = arith.cmpf ogt, %95, %96 : vector<16x128xf32>
    %cst_48 = arith.constant 0.000000e+00 : f32
    %98 = vector.broadcast %cst_48 : f32 to vector<16x128xf32>
    %99 = arith.minimumf %95, %98 : vector<16x128xf32>
    %100 = math.exp %99 : vector<16x128xf32>
    %cst_49 = arith.constant 1.000000e+00 : f32
    %101 = vector.broadcast %cst_49 : f32 to vector<16x128xf32>
    %102 = arith.subf %100, %101 : vector<16x128xf32>
    %103 = arith.select %97, %95, %102 : vector<16x128xi1>, vector<16x128xf32>
    %c3_50 = arith.constant 3 : index
    %c0_51 = arith.constant 0 : index
    %c0_52 = arith.constant 0 : index
    %104 = vector.load %arg3[%c3_50, %c0_51, %c0_52] : memref<6x16x16xbf16, #tpu.memory_space<vmem>>, vector<1x16x16xbf16>
    %105 = vector.shape_cast %104 : vector<1x16x16xbf16> to vector<16x16xbf16>
    %cst_53 = arith.constant dense<0.000000e+00> : vector<16x128xf32>
    %106 = tpu.matmul %105, %61, %cst_53 {dimension_numbers = #tpu.dot_dimension_numbers<[1], [0], [0], [1], [0, 0, 1, 1], [], []>} : vector<16x16xbf16>, vector<16x128xbf16>, vector<16x128xf32> -> vector<16x128xf32>
    %c0_54 = arith.constant 0 : index
    %c5 = arith.constant 5 : index
    %107 = vector.load %arg4[%c0_54, %c5] : memref<16x9xf32, #tpu.memory_space<vmem>>, vector<16x1xf32>
    %108 = vector.broadcast %107 : vector<16x1xf32> to vector<16x128xf32>
    %109 = arith.addf %106, %108 : vector<16x128xf32>
    %cst_55 = arith.constant 0.000000e+00 : f32
    %110 = vector.broadcast %cst_55 : f32 to vector<16x128xf32>
    %111 = arith.cmpf ogt, %109, %110 : vector<16x128xf32>
    %cst_56 = arith.constant 0.000000e+00 : f32
    %112 = vector.broadcast %cst_56 : f32 to vector<16x128xf32>
    %113 = arith.minimumf %109, %112 : vector<16x128xf32>
    %114 = math.exp %113 : vector<16x128xf32>
    %cst_57 = arith.constant 1.000000e+00 : f32
    %115 = vector.broadcast %cst_57 : f32 to vector<16x128xf32>
    %116 = arith.subf %114, %115 : vector<16x128xf32>
    %117 = arith.select %111, %109, %116 : vector<16x128xi1>, vector<16x128xf32>
    %118 = arith.addf %117, %103 : vector<16x128xf32>
    %119 = arith.truncf %118 : vector<16x128xf32> to vector<16x128xbf16>
    %c18_i32 = arith.constant 18 : i32
    %120 = tpu.dynamic_rotate %118 by %c18_i32 dim 1 : vector<16x128xf32>, i32 -> vector<16x128xf32>
    %c18_i32_58 = arith.constant 18 : i32
    %121 = vector.broadcast %c18_i32_58 : i32 to vector<16x128xi32>
    %122 = arith.cmpi sge, %0, %121 : vector<16x128xi32>
    %cst_59 = arith.constant 0.000000e+00 : f32
    %123 = vector.broadcast %cst_59 : f32 to vector<16x128xf32>
    %124 = arith.select %122, %120, %123 : vector<16x128xi1>, vector<16x128xf32>
    %125 = arith.truncf %124 : vector<16x128xf32> to vector<16x128xbf16>
    %c9_i32 = arith.constant 9 : i32
    %126 = tpu.dynamic_rotate %118 by %c9_i32 dim 1 : vector<16x128xf32>, i32 -> vector<16x128xf32>
    %c9_i32_60 = arith.constant 9 : i32
    %127 = vector.broadcast %c9_i32_60 : i32 to vector<16x128xi32>
    %128 = arith.cmpi sge, %0, %127 : vector<16x128xi32>
    %cst_61 = arith.constant 0.000000e+00 : f32
    %129 = vector.broadcast %cst_61 : f32 to vector<16x128xf32>
    %130 = arith.select %128, %126, %129 : vector<16x128xi1>, vector<16x128xf32>
    %131 = arith.truncf %130 : vector<16x128xf32> to vector<16x128xbf16>
    %132 = tpu.concatenate %125, %131, %119 in 0 : vector<16x128xbf16>, vector<16x128xbf16>, vector<16x128xbf16> -> vector<48x128xbf16>
    %c2_62 = arith.constant 2 : index
    %c0_63 = arith.constant 0 : index
    %c0_64 = arith.constant 0 : index
    %133 = vector.load %arg2[%c2_62, %c0_63, %c0_64] : memref<3x16x48xbf16, #tpu.memory_space<vmem>>, vector<1x16x48xbf16>
    %134 = vector.shape_cast %133 : vector<1x16x48xbf16> to vector<16x48xbf16>
    %cst_65 = arith.constant dense<0.000000e+00> : vector<16x128xf32>
    %135 = tpu.matmul %134, %132, %cst_65 {dimension_numbers = #tpu.dot_dimension_numbers<[1], [0], [0], [1], [0, 0, 1, 1], [], []>} : vector<16x48xbf16>, vector<48x128xbf16>, vector<16x128xf32> -> vector<16x128xf32>
    %c0_66 = arith.constant 0 : index
    %c6 = arith.constant 6 : index
    %136 = vector.load %arg4[%c0_66, %c6] : memref<16x9xf32, #tpu.memory_space<vmem>>, vector<16x1xf32>
    %137 = vector.broadcast %136 : vector<16x1xf32> to vector<16x128xf32>
    %138 = arith.addf %135, %137 : vector<16x128xf32>
    %cst_67 = arith.constant 0.000000e+00 : f32
    %139 = vector.broadcast %cst_67 : f32 to vector<16x128xf32>
    %140 = arith.cmpf ogt, %138, %139 : vector<16x128xf32>
    %cst_68 = arith.constant 0.000000e+00 : f32
    %141 = vector.broadcast %cst_68 : f32 to vector<16x128xf32>
    %142 = arith.minimumf %138, %141 : vector<16x128xf32>
    %143 = math.exp %142 : vector<16x128xf32>
    %cst_69 = arith.constant 1.000000e+00 : f32
    %144 = vector.broadcast %cst_69 : f32 to vector<16x128xf32>
    %145 = arith.subf %143, %144 : vector<16x128xf32>
    %146 = arith.select %140, %138, %145 : vector<16x128xi1>, vector<16x128xf32>
    %c4_70 = arith.constant 4 : index
    %c0_71 = arith.constant 0 : index
    %c0_72 = arith.constant 0 : index
    %147 = vector.load %arg3[%c4_70, %c0_71, %c0_72] : memref<6x16x16xbf16, #tpu.memory_space<vmem>>, vector<1x16x16xbf16>
    %148 = vector.shape_cast %147 : vector<1x16x16xbf16> to vector<16x16xbf16>
    %149 = arith.truncf %146 : vector<16x128xf32> to vector<16x128xbf16>
    %cst_73 = arith.constant dense<0.000000e+00> : vector<16x128xf32>
    %150 = tpu.matmul %148, %149, %cst_73 {dimension_numbers = #tpu.dot_dimension_numbers<[1], [0], [0], [1], [0, 0, 1, 1], [], []>} : vector<16x16xbf16>, vector<16x128xbf16>, vector<16x128xf32> -> vector<16x128xf32>
    %c0_74 = arith.constant 0 : index
    %c7 = arith.constant 7 : index
    %151 = vector.load %arg4[%c0_74, %c7] : memref<16x9xf32, #tpu.memory_space<vmem>>, vector<16x1xf32>
    %152 = vector.broadcast %151 : vector<16x1xf32> to vector<16x128xf32>
    %153 = arith.addf %150, %152 : vector<16x128xf32>
    %cst_75 = arith.constant 0.000000e+00 : f32
    %154 = vector.broadcast %cst_75 : f32 to vector<16x128xf32>
    %155 = arith.cmpf ogt, %153, %154 : vector<16x128xf32>
    %cst_76 = arith.constant 0.000000e+00 : f32
    %156 = vector.broadcast %cst_76 : f32 to vector<16x128xf32>
    %157 = arith.minimumf %153, %156 : vector<16x128xf32>
    %158 = math.exp %157 : vector<16x128xf32>
    %cst_77 = arith.constant 1.000000e+00 : f32
    %159 = vector.broadcast %cst_77 : f32 to vector<16x128xf32>
    %160 = arith.subf %158, %159 : vector<16x128xf32>
    %161 = arith.select %155, %153, %160 : vector<16x128xi1>, vector<16x128xf32>
    %c5_78 = arith.constant 5 : index
    %c0_79 = arith.constant 0 : index
    %c0_80 = arith.constant 0 : index
    %162 = vector.load %arg3[%c5_78, %c0_79, %c0_80] : memref<6x16x16xbf16, #tpu.memory_space<vmem>>, vector<1x16x16xbf16>
    %163 = vector.shape_cast %162 : vector<1x16x16xbf16> to vector<16x16xbf16>
    %cst_81 = arith.constant dense<0.000000e+00> : vector<16x128xf32>
    %164 = tpu.matmul %163, %119, %cst_81 {dimension_numbers = #tpu.dot_dimension_numbers<[1], [0], [0], [1], [0, 0, 1, 1], [], []>} : vector<16x16xbf16>, vector<16x128xbf16>, vector<16x128xf32> -> vector<16x128xf32>
    %c0_82 = arith.constant 0 : index
    %c8 = arith.constant 8 : index
    %165 = vector.load %arg4[%c0_82, %c8] : memref<16x9xf32, #tpu.memory_space<vmem>>, vector<16x1xf32>
    %166 = vector.broadcast %165 : vector<16x1xf32> to vector<16x128xf32>
    %167 = arith.addf %164, %166 : vector<16x128xf32>
    %cst_83 = arith.constant 0.000000e+00 : f32
    %168 = vector.broadcast %cst_83 : f32 to vector<16x128xf32>
    %169 = arith.cmpf ogt, %167, %168 : vector<16x128xf32>
    %cst_84 = arith.constant 0.000000e+00 : f32
    %170 = vector.broadcast %cst_84 : f32 to vector<16x128xf32>
    %171 = arith.minimumf %167, %170 : vector<16x128xf32>
    %172 = math.exp %171 : vector<16x128xf32>
    %cst_85 = arith.constant 1.000000e+00 : f32
    %173 = vector.broadcast %cst_85 : f32 to vector<16x128xf32>
    %174 = arith.subf %172, %173 : vector<16x128xf32>
    %175 = arith.select %169, %167, %174 : vector<16x128xi1>, vector<16x128xf32>
    %176 = arith.addf %175, %161 : vector<16x128xf32>
    %cst_86 = arith.constant 0.000000e+00 : f32
    %177 = vector.broadcast %cst_86 : f32 to vector<16x128xf32>
    %178 = arith.cmpf ogt, %176, %177 : vector<16x128xf32>
    %cst_87 = arith.constant 0.000000e+00 : f32
    %179 = vector.broadcast %cst_87 : f32 to vector<16x128xf32>
    %180 = arith.minimumf %176, %179 : vector<16x128xf32>
    %181 = math.exp %180 : vector<16x128xf32>
    %cst_88 = arith.constant 1.000000e+00 : f32
    %182 = vector.broadcast %cst_88 : f32 to vector<16x128xf32>
    %183 = arith.subf %181, %182 : vector<16x128xf32>
    %184 = arith.select %178, %176, %183 : vector<16x128xi1>, vector<16x128xf32>
    %c3_i32_89 = arith.constant 3 : i32
    %185 = tpu.dynamic_rotate %184 by %c3_i32_89 dim 1 : vector<16x128xf32>, i32 -> vector<16x128xf32>
    %c3_i32_90 = arith.constant 3 : i32
    %186 = vector.broadcast %c3_i32_90 : i32 to vector<16x128xi32>
    %187 = arith.cmpi sge, %0, %186 : vector<16x128xi32>
    %cst_91 = arith.constant 0.000000e+00 : f32
    %188 = vector.broadcast %cst_91 : f32 to vector<16x128xf32>
    %189 = arith.select %187, %185, %188 : vector<16x128xi1>, vector<16x128xf32>
    %190 = arith.truncf %189 : vector<16x128xf32> to vector<16x128xbf16>
    %c2_i32_92 = arith.constant 2 : i32
    %191 = tpu.dynamic_rotate %184 by %c2_i32_92 dim 1 : vector<16x128xf32>, i32 -> vector<16x128xf32>
    %c2_i32_93 = arith.constant 2 : i32
    %192 = vector.broadcast %c2_i32_93 : i32 to vector<16x128xi32>
    %193 = arith.cmpi sge, %0, %192 : vector<16x128xi32>
    %cst_94 = arith.constant 0.000000e+00 : f32
    %194 = vector.broadcast %cst_94 : f32 to vector<16x128xf32>
    %195 = arith.select %193, %191, %194 : vector<16x128xi1>, vector<16x128xf32>
    %196 = arith.truncf %195 : vector<16x128xf32> to vector<16x128xbf16>
    %c1_i32_95 = arith.constant 1 : i32
    %197 = tpu.dynamic_rotate %184 by %c1_i32_95 dim 1 : vector<16x128xf32>, i32 -> vector<16x128xf32>
    %c1_i32_96 = arith.constant 1 : i32
    %198 = vector.broadcast %c1_i32_96 : i32 to vector<16x128xi32>
    %199 = arith.cmpi sge, %0, %198 : vector<16x128xi32>
    %cst_97 = arith.constant 0.000000e+00 : f32
    %200 = vector.broadcast %cst_97 : f32 to vector<16x128xf32>
    %201 = arith.select %199, %197, %200 : vector<16x128xi1>, vector<16x128xf32>
    %202 = arith.truncf %201 : vector<16x128xf32> to vector<16x128xbf16>
    %203 = arith.truncf %184 : vector<16x128xf32> to vector<16x128xbf16>
    %204 = tpu.concatenate %190, %196, %202, %203 in 0 : vector<16x128xbf16>, vector<16x128xbf16>, vector<16x128xbf16>, vector<16x128xbf16> -> vector<64x128xbf16>
    %c0_98 = arith.constant 0 : index
    %c0_99 = arith.constant 0 : index
    %205 = vector.load %arg5[%c0_98, %c0_99] : memref<32x64xbf16, #tpu.memory_space<vmem>>, vector<32x64xbf16>
    %cst_100 = arith.constant dense<0.000000e+00> : vector<32x128xf32>
    %206 = tpu.matmul %205, %204, %cst_100 {dimension_numbers = #tpu.dot_dimension_numbers<[1], [0], [0], [1], [0, 0, 1, 1], [], []>} : vector<32x64xbf16>, vector<64x128xbf16>, vector<32x128xf32> -> vector<32x128xf32>
    %c0_101 = arith.constant 0 : index
    %c0_102 = arith.constant 0 : index
    %207 = vector.load %arg6[%c0_101, %c0_102] : memref<32x1xf32, #tpu.memory_space<vmem>>, vector<32x1xf32>
    %208 = vector.broadcast %207 : vector<32x1xf32> to vector<32x128xf32>
    %209 = arith.addf %206, %208 : vector<32x128xf32>
    %210 = tpu.iota {dimensions = array<i32: 0>} : vector<128x64xi32>
    %211 = tpu.iota {dimensions = array<i32: 1>} : vector<128x64xi32>
    %c2_i32_103 = arith.constant 2 : i32
    %212 = vector.broadcast %c2_i32_103 : i32 to vector<128x64xi32>
    %213 = arith.muli %211, %212 : vector<128x64xi32>
    %214 = arith.cmpi eq, %210, %213 : vector<128x64xi32>
    %215 = arith.extui %214 : vector<128x64xi1> to vector<128x64xi32>
    %216 = arith.sitofp %215 : vector<128x64xi32> to vector<128x64xf32>
    %cst_104 = arith.constant dense<0.000000e+00> : vector<32x64xf32>
    %217 = tpu.matmul %209, %216, %cst_104 {dimension_numbers = #tpu.dot_dimension_numbers<[1], [0], [0], [1], [0, 0, 1, 1], [], []>} : vector<32x128xf32>, vector<128x64xf32>, vector<32x64xf32> -> vector<32x64xf32>
    %c0_105 = arith.constant 0 : index
    %c0_106 = arith.constant 0 : index
    %c0_107 = arith.constant 0 : index
    %218 = vector.load %arg7[%c0_105, %c0_106, %c0_107] : memref<1x32x64xf32, #tpu.memory_space<vmem>>, vector<1x32x64xf32>
    %219 = vector.shape_cast %218 : vector<1x32x64xf32> to vector<32x64xf32>
    %220 = vector.shape_cast %217 : vector<32x64xf32> to vector<1x32x64xf32>
    tpu.vector_store %arg7[%c0_105, %c0_106, %c0_107], %220 {strides = array<i32>} : memref<1x32x64xf32, #tpu.memory_space<vmem>>, vector<1x32x64xf32>,
    return
  }
  func.func @transform_0(%arg0: i32) -> (i32, i32, i32) {
    %c0_i32 = arith.constant 0 : i32
    %c0_i32_0 = arith.constant 0 : i32
    %c0_i32_1 = arith.constant 0 : i32
    return %arg0, %c0_i32, %c0_i32_0 : i32, i32, i32
  }
  func.func @transform_1(%arg0: i32) -> (i32, i32, i32) {
    %c0_i32 = arith.constant 0 : i32
    %c0_i32_0 = arith.constant 0 : i32
    %c0_i32_1 = arith.constant 0 : i32
    %c0_i32_2 = arith.constant 0 : i32
    return %c0_i32, %c0_i32_0, %c0_i32_1 : i32, i32, i32
  }
  func.func @transform_2(%arg0: i32) -> (i32, i32, i32) {
    %c0_i32 = arith.constant 0 : i32
    %c0_i32_0 = arith.constant 0 : i32
    %c0_i32_1 = arith.constant 0 : i32
    %c0_i32_2 = arith.constant 0 : i32
    return %c0_i32, %c0_i32_0, %c0_i32_1 : i32, i32, i32
  }
  func.func @transform_3(%arg0: i32) -> (i32, i32) {
    %c0_i32 = arith.constant 0 : i32
    %c0_i32_0 = arith.constant 0 : i32
    %c0_i32_1 = arith.constant 0 : i32
    return %c0_i32, %c0_i32_0 : i32, i32
  }
  func.func @transform_4(%arg0: i32) -> (i32, i32) {
    %c0_i32 = arith.constant 0 : i32
    %c0_i32_0 = arith.constant 0 : i32
    %c0_i32_1 = arith.constant 0 : i32
    return %c0_i32, %c0_i32_0 : i32, i32
  }
  func.func @transform_5(%arg0: i32) -> (i32, i32) {
    %c0_i32 = arith.constant 0 : i32
    %c0_i32_0 = arith.constant 0 : i32
    %c0_i32_1 = arith.constant 0 : i32
    return %c0_i32, %c0_i32_0 : i32, i32
  }
  func.func @transform_6(%arg0: i32) -> (i32, i32, i32) {
    %c0_i32 = arith.constant 0 : i32
    %c0_i32_0 = arith.constant 0 : i32
    %c0_i32_1 = arith.constant 0 : i32
    return %arg0, %c0_i32, %c0_i32_0 : i32, i32, i32
  }
}

</mosaic_0001>

<llo_original>
// kernel: tpu_custom_call.1
$region0: #{tpu_custom_call.1}
  #allocation0 [shape = 'u32[]', space=smem, size = 0x4, offset = 0x4, fixed_abs, tag = 'smem constant byte address 0x4 - core index']
  #allocation1 [shape = 'u32[72,128]{1,0:T(1,128)}', space=vmem, size = 0x9000, scoped, tag = 'internal scratch']
  %s0 = inlined_call_operand.vmem [shape: f32[2,16,128], index: 0, kind: input, shape index: {}]
  %s1 = inlined_call_operand.hbm [shape: bf16[3,16,48], index: 1, kind: input, shape index: {}]
  %s2 = inlined_call_operand.hbm [shape: bf16[6,16,16], index: 2, kind: input, shape index: {}]
  %s3 = inlined_call_operand.hbm [shape: f32[16,9], index: 3, kind: input, shape index: {}]
  %s4 = inlined_call_operand.hbm [shape: bf16[32,64], index: 4, kind: input, shape index: {}]
  %s5 = inlined_call_operand.vmem [shape: f32[32,1], index: 5, kind: input, shape index: {}]
  %s6 = inlined_call_operand.hbm [shape: f32[2,32,64], index: 6, kind: output, shape index: {}]
  %s7 = sld [smem:[#allocation0]]
  $region73: #{tpu_custom_call.1} parent=0
    _
  %s9 = ssub.s32 1, %s7
  %s10 = scalar_select 0, %s9, %s7
  $region1: #{tpu_custom_call.1} parent=0
    #allocation2 [shape = 'u8[12288]{0}', space=vmem, size = 0x3000, scoped, tag = 'input window, operand 1, single buffered']
    #allocation3 [shape = 's32[2]{0}', space=sflag, size = 0x8, scoped, tag = 'scoped memory for tpu_custom_call.1']
    #allocation4 [shape = 's32[2]{0}', space=sflag, size = 0x8, scoped, tag = 'scoped memory for tpu_custom_call.1']
    #allocation5 [shape = 'u8[24576]{0}', space=vmem, size = 0x6000, scoped, tag = 'input window, operand 2, single buffered']
    #allocation6 [shape = 's32[1]{0}', space=sflag, size = 0x4, scoped, tag = 'scoped memory for tpu_custom_call.1']
    #allocation7 [shape = 'u8[8192]{0}', space=vmem, size = 0x2000, scoped, tag = 'input window, operand 3, single buffered']
    #allocation8 [shape = 'u8[8192]{0}', space=vmem, size = 0x2000, scoped, tag = 'input window, operand 4, single buffered']
    #allocation9 [shape = 's32[1]{0}', space=sflag, size = 0x4, scoped, tag = 'scoped memory for tpu_custom_call.1']
    #allocation10 [shape = 'u8[32768]{0}', space=vmem, size = 0x8000, scoped, tag = 'output window, operand 0']
    %11 = vsyncpa [#allocation3], 0
    %12 = vsyncpa [#allocation6], 0
    %13 = vsyncpa [#allocation9], 0
    %14 = vsyncpa [#allocation4], 0
    %s15 = scalar_lea.sflag [#allocation4], 1
    %16 = vsyncpa %s15, 0
    loop: start=0, step=1, limit=4
    $region2: #{tpu_custom_call.1} parent=1 // loop_pre_header
      _
    $region3: #{tpu_custom_call.1} parent=1 // loop_header
      %s18 = sphi 0, %s22
      %p19 = scmp.ge.s32.totalorder %s18, 4
      %s28 = sphi 0, %s30
      %s31 = sphi 0, %s28
      %s32 = sphi 0, %s31
      %s48 = sphi 0, %s32
      %s52 = sphi 0, %s52
      %s54 = sphi 0, %s52
      %s55 = sphi 0, %s54
      %s69 = sphi 0, %s55
      %s73 = sphi 0, %s73
      %s75 = sphi 0, %s73
      %s76 = sphi 0, %s75
      %s90 = sphi 0, %s76
      %s94 = sphi 0, %s94
      %s96 = sphi 0, %s94
      %s97 = sphi 0, %s96
      %s111 = sphi 0, %s97
      %s115 = sphi 0, %s115
      %s117 = sphi 0, %s115
      %s118 = sphi 0, %s117
      %s132 = sphi 0, %s118
      %s136 = sphi 0, %s136
      %s138 = sphi 0, %s136
      %s139 = sphi 0, %s138
      %s153 = sphi 0, %s139
      %s159 = sphi 0, %s161
      %s162 = sphi 0, %s159
      %s163 = sphi 0, %s162
      %s179 = sphi 0, %s163
    $region4: #{tpu_custom_call.1} parent=1 // loop_header_branch
      %21 = sbr.rel (%p19) target = $region8
    $region5: #{tpu_custom_call.1} parent=1 // loop_body
      %s23 = ssub.s32 %s18, 1
      %s24 = ssub.s32 %s18, 2
      %s25 = sadd.s32 %s18, 1
      %s26 = ssub.s32 %s18, %s25
      %p27 = scmp.eq.s32.totalorder %s26, 0
      %s29 = sadd.s32 %s28, 1
      %s30 = scalar_select %p27, %s28, %s29
      %p33 = pneg %p27
      %p34 = scmp.eq.s32.totalorder %s18, 1
      %p35 = por %p33, %p34
      %p36 = scmp.ne.s32.totalorder %s28, %s31
      %p37 = scmp.eq.s32.totalorder %s18, 0
      %p38 = por %p36, %p37
      %p39 = scmp.ne.s32.totalorder %s28, %s31
      %p40 = scmp.eq.s32.totalorder %s23, 1
      %p41 = por %p39, %p40
      %p42 = scmp.ne.s32.totalorder %s31, %s32
      %p43 = scmp.eq.s32.totalorder %s23, 0
      %p44 = por %p42, %p43
      %p45 = scmp.ne.s32.totalorder %s31, %s32
      %p46 = scmp.eq.s32.totalorder %s24, 1
      %p47 = por %p45, %p46
      %p49 = scmp.ne.s32.totalorder %s32, %s48
      %p50 = scmp.eq.s32.totalorder %s24, 0
      %p51 = por %p49, %p50
      %s53 = sadd.s32 %s52, 1
      %p56 = scmp.eq.s32.totalorder %s18, 1
      %p57 = scmp.ne.s32.totalorder %s52, %s54
      %p58 = scmp.eq.s32.totalorder %s18, 0
      %p59 = por %p57, %p58
      %p60 = scmp.ne.s32.totalorder %s52, %s54
      %p61 = scmp.eq.s32.totalorder %s23, 1
      %p62 = por %p60, %p61
      %p63 = scmp.ne.s32.totalorder %s54, %s55
      %p64 = scmp.eq.s32.totalorder %s23, 0
      %p65 = por %p63, %p64
      %p66 = scmp.ne.s32.totalorder %s54, %s55
      %p67 = scmp.eq.s32.totalorder %s24, 1
      %p68 = por %p66, %p67
      %p70 = scmp.ne.s32.totalorder %s55, %s69
      %p71 = scmp.eq.s32.totalorder %s24, 0
      %p72 = por %p70, %p71
      %s74 = sadd.s32 %s73, 1
      %p77 = scmp.eq.s32.totalorder %s18, 1
      %p78 = scmp.ne.s32.totalorder %s73, %s75
      %p79 = scmp.eq.s32.totalorder %s18, 0
      %p80 = por %p78, %p79
      %p81 = scmp.ne.s32.totalorder %s73, %s75
      %p82 = scmp.eq.s32.totalorder %s23, 1
      %p83 = por %p81, %p82
      %p84 = scmp.ne.s32.totalorder %s75, %s76
      %p85 = scmp.eq.s32.totalorder %s23, 0
      %p86 = por %p84, %p85
      %p87 = scmp.ne.s32.totalorder %s75, %s76
      %p88 = scmp.eq.s32.totalorder %s24, 1
      %p89 = por %p87, %p88
      %p91 = scmp.ne.s32.totalorder %s76, %s90
      %p92 = scmp.eq.s32.totalorder %s24, 0
      %p93 = por %p91, %p92
      %s95 = sadd.s32 %s94, 1
      %p98 = scmp.eq.s32.totalorder %s18, 1
      %p99 = scmp.ne.s32.totalorder %s94, %s96
      %p100 = scmp.eq.s32.totalorder %s18, 0
      %p101 = por %p99, %p100
      %p102 = scmp.ne.s32.totalorder %s94, %s96
      %p103 = scmp.eq.s32.totalorder %s23, 1
      %p104 = por %p102, %p103
      %p105 = scmp.ne.s32.totalorder %s96, %s97
      %p106 = scmp.eq.s32.totalorder %s23, 0
      %p107 = por %p105, %p106
      %p108 = scmp.ne.s32.totalorder %s96, %s97
      %p109 = scmp.eq.s32.totalorder %s24, 1
      %p110 = por %p108, %p109
      %p112 = scmp.ne.s32.totalorder %s97, %s111
      %p113 = scmp.eq.s32.totalorder %s24, 0
      %p114 = por %p112, %p113
      %s116 = sadd.s32 %s115, 1
      %p119 = scmp.eq.s32.totalorder %s18, 1
      %p120 = scmp.ne.s32.totalorder %s115, %s117
      %p121 = scmp.eq.s32.totalorder %s18, 0
      %p122 = por %p120, %p121
      %p123 = scmp.ne.s32.totalorder %s115, %s117
      %p124 = scmp.eq.s32.totalorder %s23, 1
      %p125 = por %p123, %p124
      %p126 = scmp.ne.s32.totalorder %s117, %s118
      %p127 = scmp.eq.s32.totalorder %s23, 0
      %p128 = por %p126, %p127
      %p129 = scmp.ne.s32.totalorder %s117, %s118
      %p130 = scmp.eq.s32.totalorder %s24, 1
      %p131 = por %p129, %p130
      %p133 = scmp.ne.s32.totalorder %s118, %s132
      %p134 = scmp.eq.s32.totalorder %s24, 0
      %p135 = por %p133, %p134
      %s137 = sadd.s32 %s136, 1
      %p140 = scmp.eq.s32.totalorder %s18, 1
      %p141 = scmp.ne.s32.totalorder %s136, %s138
      %p142 = scmp.eq.s32.totalorder %s18, 0
      %p143 = por %p141, %p142
      %p144 = scmp.ne.s32.totalorder %s136, %s138
      %p145 = scmp.eq.s32.totalorder %s23, 1
      %p146 = por %p144, %p145
      %p147 = scmp.ne.s32.totalorder %s138, %s139
      %p148 = scmp.eq.s32.totalorder %s23, 0
      %p149 = por %p147, %p148
      %p150 = scmp.ne.s32.totalorder %s138, %s139
      %p151 = scmp.eq.s32.totalorder %s24, 1
      %p152 = por %p150, %p151
      %p154 = scmp.ne.s32.totalorder %s139, %s153
      %p155 = scmp.eq.s32.totalorder %s24, 0
      %p156 = por %p154, %p155
      %s157 = ssub.s32 %s18, %s25
      %p158 = scmp.eq.s32.totalorder %s157, 0
      %s160 = sadd.s32 %s159, 1
      %s161 = scalar_select %p158, %s159, %s160
      %p164 = pneg %p158
      %p165 = scmp.eq.s32.totalorder %s18, 1
      %p166 = por %p164, %p165
      %p167 = scmp.ne.s32.totalorder %s159, %s162
      %p168 = scmp.eq.s32.totalorder %s18, 0
      %p169 = por %p167, %p168
      %p170 = scmp.ne.s32.totalorder %s159, %s162
      %p171 = scmp.eq.s32.totalorder %s23, 1
      %p172 = por %p170, %p171
      %p173 = scmp.ne.s32.totalorder %s162, %s163
      %p174 = scmp.eq.s32.totalorder %s23, 0
      %p175 = por %p173, %p174
      %p176 = scmp.ne.s32.totalorder %s162, %s163
      %p177 = scmp.eq.s32.totalorder %s24, 1
      %p178 = por %p176, %p177
      %p180 = scmp.ne.s32.totalorder %s163, %s179
      %p181 = scmp.eq.s32.totalorder %s24, 0
      %p182 = por %p180, %p181
      %p183 = scmp.le.s32.totalorder 1, %s18
      %p184 = scmp.lt.s32.totalorder %s18, 3
      %p185 = pnand %p183, %p184
      %p186 = pneg %p185
      // Predicated region
      $region9: #{tpu_custom_call.1} parent=5 // pred_check
        _
      $region10: #{tpu_custom_call.1} parent=5 // pred_check_branch
        %188 = sbr.rel (%p185) target = $region12
      $region11: #{tpu_custom_call.1} parent=5 // pred_region
        %s189 = ssub.s32 %s18, 1
        // Predicated region
        $region13: #{tpu_custom_call.1} parent=11 // pred_check
          %p190 = pneg %p65
        $region14: #{tpu_custom_call.1} parent=11 // pred_check_branch
          %192 = sbr.rel (%p190) target = $region16
        $region15: #{tpu_custom_call.1} parent=11 // pred_region
          %194 = vsyncadd [#allocation3], 0
          %s195 = sshll.u32 %s1, 4
          %s196 = int_to_ptr.hbm [resolvable:$true] %s195
          %s197 = sshll.u32 [#allocation2], 4
          %s198 = int_to_ptr.vmem [resolvable:$true] %s197
          %203 = dma.hbm_to_vmem [thread:$0]  %s196, 384, %s198, [#allocation3], 64, 64, 4
        $region16: #{tpu_custom_call.1} parent=11 // pred_fallthru
          _
        // Predicated region
        $region17: #{tpu_custom_call.1} parent=11 // pred_check
          %p204 = pneg %p86
        $region18: #{tpu_custom_call.1} parent=11 // pred_check_branch
          %206 = sbr.rel (%p204) target = $region20
        $region19: #{tpu_custom_call.1} parent=11 // pred_region
          %208 = vsyncadd [#allocation6], 0
          %s209 = sshll.u32 %s2, 4
          %s210 = int_to_ptr.hbm [resolvable:$true] %s209
          %s211 = sshll.u32 [#allocation5], 4
          %s212 = int_to_ptr.vmem [resolvable:$true] %s211
          %217 = dma.hbm_to_vmem [thread:$0]  %s210, 768, %s212, [#allocation6], 64, 64, 4
        $region20: #{tpu_custom_call.1} parent=11 // pred_fallthru
          _
        // Predicated region
        $region21: #{tpu_custom_call.1} parent=11 // pred_check
          %p218 = pneg %p107
        $region22: #{tpu_custom_call.1} parent=11 // pred_check_branch
          %220 = sbr.rel (%p218) target = $region24
        $region23: #{tpu_custom_call.1} parent=11 // pred_region
          %222 = vsyncadd [#allocation6], 0
          %s223 = sshll.u32 %s3, 4
          %s224 = int_to_ptr.hbm [resolvable:$true] %s223
          %s225 = sshll.u32 [#allocation7], 4
          %s226 = int_to_ptr.vmem [resolvable:$true] %s225
          %231 = dma.hbm_to_vmem [thread:$0]  %s224, 256, %s226, [#allocation6], 128, 128, 8
        $region24: #{tpu_custom_call.1} parent=11 // pred_fallthru
          _
        // Predicated region
        $region25: #{tpu_custom_call.1} parent=11 // pred_check
          %p232 = pneg %p128
        $region26: #{tpu_custom_call.1} parent=11 // pred_check_branch
          %234 = sbr.rel (%p232) target = $region28
        $region27: #{tpu_custom_call.1} parent=11 // pred_region
          %236 = vsyncadd [#allocation9], 0
          %s237 = sshll.u32 %s4, 4
          %s238 = int_to_ptr.hbm [resolvable:$true] %s237
          %s239 = sshll.u32 [#allocation8], 4
          %s240 = int_to_ptr.vmem [resolvable:$true] %s239
          %245 = dma.hbm_to_vmem [thread:$0]  %s238, 256, %s240, [#allocation9], 64, 64, 4
        $region28: #{tpu_custom_call.1} parent=11 // pred_fallthru
          _
        // Predicated region
        $region29: #{tpu_custom_call.1} parent=11 // pred_check
          %p246 = pneg %p149
        $region30: #{tpu_custom_call.1} parent=11 // pred_check_branch
          %248 = sbr.rel (%p246) target = $region32
        $region31: #{tpu_custom_call.1} parent=11 // pred_region
          _
        $region32: #{tpu_custom_call.1} parent=11 // pred_fallthru
          _
      $region12: #{tpu_custom_call.1} parent=5 // pred_fallthru
        _
      %p249 = scmp.lt.s32.totalorder %s18, 2
      // Predicated region
      $region33: #{tpu_custom_call.1} parent=5 // pred_check
        %p250 = pneg %p249
      $region34: #{tpu_custom_call.1} parent=5 // pred_check_branch
        %252 = sbr.rel (%p250) target = $region36
      $region35: #{tpu_custom_call.1} parent=5 // pred_region
        // Predicated region
        $region37: #{tpu_custom_call.1} parent=35 // pred_check
          %p253 = pneg %p38
        $region38: #{tpu_custom_call.1} parent=35 // pred_check_branch
          %255 = sbr.rel (%p253) target = $region40
        $region39: #{tpu_custom_call.1} parent=35 // pred_region
          %p256 = scmp.lt.s32.totalorder %s18, 1
          %s257 = scalar_select %p256, %s18, 1
          %s258 = smul.addr %s257, 2
          %s259 = smul.addr %s258, 8
          %s260 = scalar_lea.vmem %s0, %s259
        $region40: #{tpu_custom_call.1} parent=35 // pred_fallthru
          _
      $region36: #{tpu_custom_call.1} parent=5 // pred_fallthru
        _
      %p261 = scmp.le.s32.totalorder 1, %s18
      %p262 = scmp.lt.s32.totalorder %s18, 3
      %p263 = pnand %p261, %p262
      %p264 = pneg %p263
      // Predicated region
      $region41: #{tpu_custom_call.1} parent=5 // pred_check
        _
      $region42: #{tpu_custom_call.1} parent=5 // pred_check_branch
        %266 = sbr.rel (%p263) target = $region44
      $region43: #{tpu_custom_call.1} parent=5 // pred_region
        %s267 = ssub.s32 %s18, 1
        // Predicated region
        $region45: #{tpu_custom_call.1} parent=43 // pred_check
          %p268 = pneg %p65
        $region46: #{tpu_custom_call.1} parent=43 // pred_check_branch
          %270 = sbr.rel (%p268) target = $region48
        $region47: #{tpu_custom_call.1} parent=43 // pred_region
          %272 = dma.done [#allocation3], 384
        $region48: #{tpu_custom_call.1} parent=43 // pred_fallthru
          _
        // Predicated region
        $region49: #{tpu_custom_call.1} parent=43 // pred_check
          %p273 = pneg %p86
        $region50: #{tpu_custom_call.1} parent=43 // pred_check_branch
          %275 = sbr.rel (%p273) target = $region52
        $region51: #{tpu_custom_call.1} parent=43 // pred_region
          %277 = dma.done [#allocation6], 768
        $region52: #{tpu_custom_call.1} parent=43 // pred_fallthru
          _
        // Predicated region
        $region53: #{tpu_custom_call.1} parent=43 // pred_check
          %p278 = pneg %p107
        $region54: #{tpu_custom_call.1} parent=43 // pred_check_branch
          %280 = sbr.rel (%p278) target = $region56
        $region55: #{tpu_custom_call.1} parent=43 // pred_region
          %282 = dma.done [#allocation6], 256
        $region56: #{tpu_custom_call.1} parent=43 // pred_fallthru
          _
        // Predicated region
        $region57: #{tpu_custom_call.1} parent=43 // pred_check
          %p283 = pneg %p128
        $region58: #{tpu_custom_call.1} parent=43 // pred_check_branch
          %285 = sbr.rel (%p283) target = $region60
        $region59: #{tpu_custom_call.1} parent=43 // pred_region
          %287 = dma.done [#allocation9], 256
        $region60: #{tpu_custom_call.1} parent=43 // pred_fallthru
          _
        %p288 = scmp.lt.s32.totalorder %s23, 1
        %s289 = scalar_select %p288, %s23, 1
        %s290 = smul.addr %s289, 2
        %s291 = smul.addr %s290, 8
        %s292 = scalar_lea.vmem %s0, %s291
        %p293 = pneg %p44
        %p294 = pneg %p41
        %p295 = pneg %p65
        %p296 = pneg %p62
        %p297 = pneg %p86
        %p298 = pneg %p83
        %p299 = pneg %p107
        %p300 = pneg %p104
        %p301 = pneg %p128
        %p302 = pneg %p125
        %p303 = pneg %p149
        %p304 = pneg %p146
        %p305 = pneg %p175
        %p306 = pneg %p172
        %s307 = sand.u32 %s162, 1
        %s308 = scalar_lea.sflag [#allocation4], %s307
        %s309 = sand.u32 %s162, 1
        %s310 = smul.addr %s309, 32
        %s311 = scalar_lea.vmem [#allocation10], %s310
        %p312 = scmp.lt.s32.totalorder %s23, 1
        %s313 = scalar_select %p312, %s23, 1
        %s314 = smul.addr %s313, 2
        %s315 = smul.addr %s314, 8
        %s316 = scalar_lea.vmem %s0, %s315
        %v318 = vlaneseq
        %v319 = vand.u32 %v318, 127
        %v320 = vld [vmem:[%s316] sm:$0xff]
        %v321 = vld [vmem:[%s316 + $0x8] sm:$0xff]
        %v322 = vpack.c.bf16 %v320, %v320
        %v323 = vpack.c.bf16 %v321, %v321
        %324 = vrot.lane.b32.xlu0 %v320, 2
        %v325 = vpop.permute.xlu0 %324
        %326 = vrot.lane.b32.xlu0 %v321, 2
        %v327 = vpop.permute.xlu0 %326
        %vm328 = vcmp.ge.s32.totalorder %v319, 2
        %v329 = vsel %vm328, %v325, 0.0
        %v330 = vsel %vm328, %v327, 0.0
        %v331 = vpack.c.bf16 %v329, %v329
        %v332 = vpack.c.bf16 %v330, %v330
        %333 = vrot.lane.b32.xlu0 %v320, 1
        %v334 = vpop.permute.xlu0 %333
        %335 = vrot.lane.b32.xlu0 %v321, 1
        %v336 = vpop.permute.xlu0 %335
        %vm337 = vcmp.ge.s32.totalorder %v319, 1
        %v338 = vsel %vm337, %v334, 0.0
        %v339 = vsel %vm337, %v336, 0.0
        %v340 = vpack.c.bf16 %v338, %v338
        %v341 = vpack.c.bf16 %v339, %v339
        %v344 = vunpack.c.l.b16 %v331
        %v345 = vunpack.c.l.b16 %v332
        %v346 = vpack.c.b16 %v345, %v344
        %v350 = vunpack.c.l.b16 %v340
        %v351 = vunpack.c.l.b16 %v341
        %v352 = vpack.c.b16 %v351, %v350
        %v356 = vunpack.c.l.b16 %v322
        %v357 = vunpack.c.l.b16 %v323
        %v358 = vpack.c.b16 %v357, %v356
        %v360 = vld [vmem:[#allocation2] sm:$0xf]
        %v361 = vld [vmem:[#allocation2 + $0x4] sm:$0xf]
        %v362 = vld [vmem:[#allocation7] sm:$0xff]
        %v363 = vld [vmem:[#allocation7 + $0x8] sm:$0xff]
        %365 = vset.pattern.permute.xlu0 0
        %366 = vperm.xlu0 %365, %v362
        %v367 = vpop.permute.xlu0 %366
        %370 = vset.pattern.permute.xlu0 0
        %371 = vperm.xlu0 %370, %v363
        %v372 = vpop.permute.xlu0 %371
        %v376 = vunpack.c.l.b16 %v360
        %v377 = vunpack.c.l.b16 %v361
        %v378 = vpack.c.b16 %v377, %v376
        %vm379 = vcmask 392192
        %v381 = vsel %vm379, %v378, 0
        %383 = vmatpush.bf16.msra.mxu0 0
        %384 = vmatpush.bf16.msra.mxu0 0
        %385 = vmatpush.bf16.msra.mxu0 0
        %386 = vmatpush.bf16.msra.mxu0 0
        %387 = vmatpush.bf16.msra.mxu0 0
        %388 = vmatpush.bf16.msra.mxu0 %v358
        %389 = vmatpush.bf16.msra.mxu0 %v352
        %390 = vmatpush.bf16.msra.mxu0 %v346
        %391 = vmatmul.bf16.gmra.mxu0 %v381
        %v392 = vpop.f32.mrf.mxu0
        %v393 = vadd.f32 %v367, %v392
        %v394 = vpop.f32.mrf.mxu0
        %v395 = vadd.f32 %v372, %v394
        %396 = vdwg.mxu0
        %vm397 = vcmp.gt.f32.partialorder %v393, 0.0
        %vm398 = vcmp.gt.f32.partialorder %v395, 0.0
        %v399 = vmin.f32 %v393, 0.0
        %v400 = vmin.f32 %v395, 0.0
        %v401 = vmul.f32 %v399, 1.442695
        %v402 = vpow.pop %v401
        %v403 = vmul.f32 %v400, 1.442695
        %v404 = vpow.pop %v403
        %v405 = vsub.f32 %v402, 1.0
        %v406 = vsub.f32 %v404, 1.0
        %v407 = vsel %vm397, %v393, %v405
        %v408 = vsel %vm398, %v395, %v406
        %v409 = vld [vmem:[#allocation5] sm:$0xf]
        %v410 = vld [vmem:[#allocation5 + $0x4] sm:$0xf]
        %v411 = vpack.c.bf16 %v408, %v407
        %412 = vset.pattern.permute.xlu0 1
        %413 = vperm.xlu0 %412, %v362
        %v414 = vpop.permute.xlu0 %413
        %416 = vset.pattern.permute.xlu0 1
        %417 = vperm.xlu0 %416, %v363
        %v418 = vpop.permute.xlu0 %417
        %v422 = vunpack.c.l.b16 %v409
        %v423 = vunpack.c.l.b16 %v410
        %v424 = vpack.c.b16 %v423, %v422
        %vm425 = vcmask 130048
        %v427 = vsel %vm425, %v424, 0
        %429 = vmatpush.bf16.msra.mxu0 0
        %430 = vmatpush.bf16.msra.mxu0 0
        %431 = vmatpush.bf16.msra.mxu0 0
        %432 = vmatpush.bf16.msra.mxu0 0
        %433 = vmatpush.bf16.msra.mxu0 0
        %434 = vmatpush.bf16.msra.mxu0 0
        %435 = vmatpush.bf16.msra.mxu0 0
        %436 = vmatpush.bf16.msra.mxu0 %v411
        %437 = vmatmul.bf16.gmra.mxu0 %v427
        %v438 = vpop.f32.mrf.mxu0
        %v439 = vadd.f32 %v414, %v438
        %v440 = vpop.f32.mrf.mxu0
        %v441 = vadd.f32 %v418, %v440
        %442 = vdwg.mxu0
        %vm443 = vcmp.gt.f32.partialorder %v439, 0.0
        %vm444 = vcmp.gt.f32.partialorder %v441, 0.0
        %v445 = vmin.f32 %v439, 0.0
        %v446 = vmin.f32 %v441, 0.0
        %v447 = vmul.f32 %v445, 1.442695
        %v448 = vpow.pop %v447
        %v449 = vmul.f32 %v446, 1.442695
        %v450 = vpow.pop %v449
        %v451 = vsub.f32 %v448, 1.0
        %v452 = vsub.f32 %v450, 1.0
        %v453 = vsel %vm443, %v439, %v451
        %v454 = vsel %vm444, %v441, %v452
        %s455 = scalar_lea.vmem [#allocation5], 8
        %v456 = vld [vmem:[%s455] sm:$0xf]
        %v457 = vld [vmem:[%s455 + $0x4] sm:$0xf]
        %458 = vset.pattern.permute.xlu0 2
        %459 = vperm.xlu0 %458, %v362
        %v460 = vpop.permute.xlu0 %459
        %462 = vset.pattern.permute.xlu0 2
        %463 = vperm.xlu0 %462, %v363
        %v464 = vpop.permute.xlu0 %463
        %v468 = vunpack.c.l.b16 %v456
        %v469 = vunpack.c.l.b16 %v457
        %v470 = vpack.c.b16 %v469, %v468
        %v472 = vsel %vm425, %v470, 0
        %474 = vmatpush.bf16.msra.mxu0 0
        %475 = vmatpush.bf16.msra.mxu0 0
        %476 = vmatpush.bf16.msra.mxu0 0
        %477 = vmatpush.bf16.msra.mxu0 0
        %478 = vmatpush.bf16.msra.mxu0 0
        %479 = vmatpush.bf16.msra.mxu0 0
        %480 = vmatpush.bf16.msra.mxu0 0
        %481 = vmatpush.bf16.msra.mxu0 %v358
        %482 = vmatmul.bf16.gmra.mxu0 %v472
        %v483 = vpop.f32.mrf.mxu0
        %v484 = vadd.f32 %v460, %v483
        %v485 = vpop.f32.mrf.mxu0
        %v486 = vadd.f32 %v464, %v485
        %487 = vdwg.mxu0
        %vm488 = vcmp.gt.f32.partialorder %v484, 0.0
        %vm489 = vcmp.gt.f32.partialorder %v486, 0.0
        %v490 = vmin.f32 %v484, 0.0
        %v491 = vmin.f32 %v486, 0.0
        %v492 = vmul.f32 %v490, 1.442695
        %v493 = vpow.pop %v492
        %v494 = vmul.f32 %v491, 1.442695
        %v495 = vpow.pop %v494
        %v496 = vsub.f32 %v493, 1.0
        %v497 = vsub.f32 %v495, 1.0
        %v498 = vsel %vm488, %v484, %v496
        %v499 = vsel %vm489, %v486, %v497
        %v500 = vadd.f32 %v498, %v453
        %v501 = vadd.f32 %v499, %v454
        %v502 = vpack.c.bf16 %v500, %v500
        %v503 = vpack.c.bf16 %v501, %v501
        %504 = vrot.lane.b32.xlu0 %v500, 6
        %v505 = vpop.permute.xlu0 %504
        %506 = vrot.lane.b32.xlu0 %v501, 6
        %v507 = vpop.permute.xlu0 %506
        %vm508 = vcmp.ge.s32.totalorder %v319, 6
        %v509 = vsel %vm508, %v505, 0.0
        %v510 = vsel %vm508, %v507, 0.0
        %v511 = vpack.c.bf16 %v509, %v509
        %v512 = vpack.c.bf16 %v510, %v510
        %513 = vrot.lane.b32.xlu0 %v500, 3
        %v514 = vpop.permute.xlu0 %513
        %515 = vrot.lane.b32.xlu0 %v501, 3
        %v516 = vpop.permute.xlu0 %515
        %vm517 = vcmp.ge.s32.totalorder %v319, 3
        %v518 = vsel %vm517, %v514, 0.0
        %v519 = vsel %vm517, %v516, 0.0
        %v520 = vpack.c.bf16 %v518, %v518
        %v521 = vpack.c.bf16 %v519, %v519
        %v524 = vunpack.c.l.b16 %v511
        %v525 = vunpack.c.l.b16 %v512
        %v526 = vpack.c.b16 %v525, %v524
        %v530 = vunpack.c.l.b16 %v520
        %v531 = vunpack.c.l.b16 %v521
        %v532 = vpack.c.b16 %v531, %v530
        %v536 = vunpack.c.l.b16 %v502
        %v537 = vunpack.c.l.b16 %v503
        %v538 = vpack.c.b16 %v537, %v536
        %s540 = scalar_lea.vmem [#allocation2], 8
        %v541 = vld [vmem:[%s540] sm:$0xf]
        %v542 = vld [vmem:[%s540 + $0x4] sm:$0xf]
        %543 = vset.pattern.permute.xlu0 3
        %544 = vperm.xlu0 %543, %v362
        %v545 = vpop.permute.xlu0 %544
        %547 = vset.pattern.permute.xlu0 3
        %548 = vperm.xlu0 %547, %v363
        %v549 = vpop.permute.xlu0 %548
        %v553 = vunpack.c.l.b16 %v541
        %v554 = vunpack.c.l.b16 %v542
        %v555 = vpack.c.b16 %v554, %v553
        %v557 = vsel %vm379, %v555, 0
        %559 = vmatpush.bf16.msra.mxu0 0
        %560 = vmatpush.bf16.msra.mxu0 0
        %561 = vmatpush.bf16.msra.mxu0 0
        %562 = vmatpush.bf16.msra.mxu0 0
        %563 = vmatpush.bf16.msra.mxu0 0
        %564 = vmatpush.bf16.msra.mxu0 %v538
        %565 = vmatpush.bf16.msra.mxu0 %v532
        %566 = vmatpush.bf16.msra.mxu0 %v526
        %567 = vmatmul.bf16.gmra.mxu0 %v557
        %v568 = vpop.f32.mrf.mxu0
        %v569 = vadd.f32 %v545, %v568
        %v570 = vpop.f32.mrf.mxu0
        %v571 = vadd.f32 %v549, %v570
        %572 = vdwg.mxu0
        %vm573 = vcmp.gt.f32.partialorder %v569, 0.0
        %vm574 = vcmp.gt.f32.partialorder %v571, 0.0
        %v575 = vmin.f32 %v569, 0.0
        %v576 = vmin.f32 %v571, 0.0
        %v577 = vmul.f32 %v575, 1.442695
        %v578 = vpow.pop %v577
        %v579 = vmul.f32 %v576, 1.442695
        %v580 = vpow.pop %v579
        %v581 = vsub.f32 %v578, 1.0
        %v582 = vsub.f32 %v580, 1.0
        %v583 = vsel %vm573, %v569, %v581
        %v584 = vsel %vm574, %v571, %v582
        %s585 = scalar_lea.vmem [#allocation5], 16
        %v586 = vld [vmem:[%s585] sm:$0xf]
        %v587 = vld [vmem:[%s585 + $0x4] sm:$0xf]
        %v588 = vpack.c.bf16 %v584, %v583
        %589 = vset.pattern.permute.xlu0 4
        %590 = vperm.xlu0 %589, %v362
        %v591 = vpop.permute.xlu0 %590
        %593 = vset.pattern.permute.xlu0 4
        %594 = vperm.xlu0 %593, %v363
        %v595 = vpop.permute.xlu0 %594
        %v599 = vunpack.c.l.b16 %v586
        %v600 = vunpack.c.l.b16 %v587
        %v601 = vpack.c.b16 %v600, %v599
        %v603 = vsel %vm425, %v601, 0
        %605 = vmatpush.bf16.msra.mxu0 0
        %606 = vmatpush.bf16.msra.mxu0 0
        %607 = vmatpush.bf16.msra.mxu0 0
        %608 = vmatpush.bf16.msra.mxu0 0
        %609 = vmatpush.bf16.msra.mxu0 0
        %610 = vmatpush.bf16.msra.mxu0 0
        %611 = vmatpush.bf16.msra.mxu0 0
        %612 = vmatpush.bf16.msra.mxu0 %v588
        %613 = vmatmul.bf16.gmra.mxu0 %v603
        %v614 = vpop.f32.mrf.mxu0
        %v615 = vadd.f32 %v591, %v614
        %v616 = vpop.f32.mrf.mxu0
        %v617 = vadd.f32 %v595, %v616
        %618 = vdwg.mxu0
        %vm619 = vcmp.gt.f32.partialorder %v615, 0.0
        %vm620 = vcmp.gt.f32.partialorder %v617, 0.0
        %v621 = vmin.f32 %v615, 0.0
        %v622 = vmin.f32 %v617, 0.0
        %v623 = vmul.f32 %v621, 1.442695
        %v624 = vpow.pop %v623
        %v625 = vmul.f32 %v622, 1.442695
        %v626 = vpow.pop %v625
        %v627 = vsub.f32 %v624, 1.0
        %v628 = vsub.f32 %v626, 1.0
        %v629 = vsel %vm619, %v615, %v627
        %v630 = vsel %vm620, %v617, %v628
        %s631 = scalar_lea.vmem [#allocation5], 24
        %v632 = vld [vmem:[%s631] sm:$0xf]
        %v633 = vld [vmem:[%s631 + $0x4] sm:$0xf]
        %634 = vset.pattern.permute.xlu0 5
        %635 = vperm.xlu0 %634, %v362
        %v636 = vpop.permute.xlu0 %635
        %638 = vset.pattern.permute.xlu0 5
        %639 = vperm.xlu0 %638, %v363
        %v640 = vpop.permute.xlu0 %639
        %v644 = vunpack.c.l.b16 %v632
        %v645 = vunpack.c.l.b16 %v633
        %v646 = vpack.c.b16 %v645, %v644
        %v648 = vsel %vm425, %v646, 0
        %650 = vmatpush.bf16.msra.mxu0 0
        %651 = vmatpush.bf16.msra.mxu0 0
        %652 = vmatpush.bf16.msra.mxu0 0
        %653 = vmatpush.bf16.msra.mxu0 0
        %654 = vmatpush.bf16.msra.mxu0 0
        %655 = vmatpush.bf16.msra.mxu0 0
        %656 = vmatpush.bf16.msra.mxu0 0
        %657 = vmatpush.bf16.msra.mxu0 %v538
        %658 = vmatmul.bf16.gmra.mxu0 %v648
        %v659 = vpop.f32.mrf.mxu0
        %v660 = vadd.f32 %v636, %v659
        %v661 = vpop.f32.mrf.mxu0
        %v662 = vadd.f32 %v640, %v661
        %663 = vdwg.mxu0
        %vm664 = vcmp.gt.f32.partialorder %v660, 0.0
        %vm665 = vcmp.gt.f32.partialorder %v662, 0.0
        %v666 = vmin.f32 %v660, 0.0
        %v667 = vmin.f32 %v662, 0.0
        %v668 = vmul.f32 %v666, 1.442695
        %v669 = vpow.pop %v668
        %v670 = vmul.f32 %v667, 1.442695
        %v671 = vpow.pop %v670
        %v672 = vsub.f32 %v669, 1.0
        %v673 = vsub.f32 %v671, 1.0
        %v674 = vsel %vm664, %v660, %v672
        %v675 = vsel %vm665, %v662, %v673
        %v676 = vadd.f32 %v674, %v629
        %v677 = vadd.f32 %v675, %v630
        %v678 = vpack.c.bf16 %v676, %v676
        %v679 = vpack.c.bf16 %v677, %v677
        %680 = vrot.lane.b32.xlu0 %v676, 18
        %v681 = vpop.permute.xlu0 %680
        %682 = vrot.lane.b32.xlu0 %v677, 18
        %v683 = vpop.permute.xlu0 %682
        %vm684 = vcmp.ge.s32.totalorder %v319, 18
        %v685 = vsel %vm684, %v681, 0.0
        %v686 = vsel %vm684, %v683, 0.0
        %v687 = vpack.c.bf16 %v685, %v685
        %v688 = vpack.c.bf16 %v686, %v686
        %689 = vrot.lane.b32.xlu0 %v676, 9
        %v690 = vpop.permute.xlu0 %689
        %691 = vrot.lane.b32.xlu0 %v677, 9
        %v692 = vpop.permute.xlu0 %691
        %vm693 = vcmp.ge.s32.totalorder %v319, 9
        %v694 = vsel %vm693, %v690, 0.0
        %v695 = vsel %vm693, %v692, 0.0
        %v696 = vpack.c.bf16 %v694, %v694
        %v697 = vpack.c.bf16 %v695, %v695
        %v700 = vunpack.c.l.b16 %v687
        %v701 = vunpack.c.l.b16 %v688
        %v702 = vpack.c.b16 %v701, %v700
        %v706 = vunpack.c.l.b16 %v696
        %v707 = vunpack.c.l.b16 %v697
        %v708 = vpack.c.b16 %v707, %v706
        %v712 = vunpack.c.l.b16 %v678
        %v713 = vunpack.c.l.b16 %v679
        %v714 = vpack.c.b16 %v713, %v712
        %s716 = scalar_lea.vmem [#allocation2], 16
        %v717 = vld [vmem:[%s716] sm:$0xf]
        %v718 = vld [vmem:[%s716 + $0x4] sm:$0xf]
        %719 = vset.pattern.permute.xlu0 6
        %720 = vperm.xlu0 %719, %v362
        %v721 = vpop.permute.xlu0 %720
        %723 = vset.pattern.permute.xlu0 6
        %724 = vperm.xlu0 %723, %v363
        %v725 = vpop.permute.xlu0 %724
        %v729 = vunpack.c.l.b16 %v717
        %v730 = vunpack.c.l.b16 %v718
        %v731 = vpack.c.b16 %v730, %v729
        %v733 = vsel %vm379, %v731, 0
        %735 = vmatpush.bf16.msra.mxu0 0
        %736 = vmatpush.bf16.msra.mxu0 0
        %737 = vmatpush.bf16.msra.mxu0 0
        %738 = vmatpush.bf16.msra.mxu0 0
        %739 = vmatpush.bf16.msra.mxu0 0
        %740 = vmatpush.bf16.msra.mxu0 %v714
        %741 = vmatpush.bf16.msra.mxu0 %v708
        %742 = vmatpush.bf16.msra.mxu0 %v702
        %743 = vmatmul.bf16.gmra.mxu0 %v733
        %v744 = vpop.f32.mrf.mxu0
        %v745 = vadd.f32 %v721, %v744
        %v746 = vpop.f32.mrf.mxu0
        %v747 = vadd.f32 %v725, %v746
        %748 = vdwg.mxu0
        %vm749 = vcmp.gt.f32.partialorder %v745, 0.0
        %vm750 = vcmp.gt.f32.partialorder %v747, 0.0
        %v751 = vmin.f32 %v745, 0.0
        %v752 = vmin.f32 %v747, 0.0
        %v753 = vmul.f32 %v751, 1.442695
        %v754 = vpow.pop %v753
        %v755 = vmul.f32 %v752, 1.442695
        %v756 = vpow.pop %v755
        %v757 = vsub.f32 %v754, 1.0
        %v758 = vsub.f32 %v756, 1.0
        %v759 = vsel %vm749, %v745, %v757
        %v760 = vsel %vm750, %v747, %v758
        %s761 = scalar_lea.vmem [#allocation5], 32
        %v762 = vld [vmem:[%s761] sm:$0xf]
        %v763 = vld [vmem:[%s761 + $0x4] sm:$0xf]
        %v764 = vpack.c.bf16 %v760, %v759
        %765 = vset.pattern.permute.xlu0 7
        %766 = vperm.xlu0 %765, %v362
        %v767 = vpop.permute.xlu0 %766
        %769 = vset.pattern.permute.xlu0 7
        %770 = vperm.xlu0 %769, %v363
        %v771 = vpop.permute.xlu0 %770
        %v775 = vunpack.c.l.b16 %v762
        %v776 = vunpack.c.l.b16 %v763
        %v777 = vpack.c.b16 %v776, %v775
        %v779 = vsel %vm425, %v777, 0
        %781 = vmatpush.bf16.msra.mxu0 0
        %782 = vmatpush.bf16.msra.mxu0 0
        %783 = vmatpush.bf16.msra.mxu0 0
        %784 = vmatpush.bf16.msra.mxu0 0
        %785 = vmatpush.bf16.msra.mxu0 0
        %786 = vmatpush.bf16.msra.mxu0 0
        %787 = vmatpush.bf16.msra.mxu0 0
        %788 = vmatpush.bf16.msra.mxu0 %v764
        %789 = vmatmul.bf16.gmra.mxu0 %v779
        %v790 = vpop.f32.mrf.mxu0
        %v791 = vadd.f32 %v767, %v790
        %v792 = vpop.f32.mrf.mxu0
        %v793 = vadd.f32 %v771, %v792
        %794 = vdwg.mxu0
        %vm795 = vcmp.gt.f32.partialorder %v791, 0.0
        %vm796 = vcmp.gt.f32.partialorder %v793, 0.0
        %v797 = vmin.f32 %v791, 0.0
        %v798 = vmin.f32 %v793, 0.0
        %v799 = vmul.f32 %v797, 1.442695
        %v800 = vpow.pop %v799
        %v801 = vmul.f32 %v798, 1.442695
        %v802 = vpow.pop %v801
        %v803 = vsub.f32 %v800, 1.0
        %v804 = vsub.f32 %v802, 1.0
        %v805 = vsel %vm795, %v791, %v803
        %v806 = vsel %vm796, %v793, %v804
        %s807 = scalar_lea.vmem [#allocation5], 40
        %v808 = vld [vmem:[%s807] sm:$0xf]
        %v809 = vld [vmem:[%s807 + $0x4] sm:$0xf]
        %810 = vset.pattern.permute.xlu0 8
        %811 = vperm.xlu0 %810, %v362
        %v812 = vpop.permute.xlu0 %811
        %814 = vset.pattern.permute.xlu0 8
        %815 = vperm.xlu0 %814, %v363
        %v816 = vpop.permute.xlu0 %815
        %v820 = vunpack.c.l.b16 %v808
        %v821 = vunpack.c.l.b16 %v809
        %v822 = vpack.c.b16 %v821, %v820
        %v824 = vsel %vm425, %v822, 0
        %826 = vmatpush.bf16.msra.mxu0 0
        %827 = vmatpush.bf16.msra.mxu0 0
        %828 = vmatpush.bf16.msra.mxu0 0
        %829 = vmatpush.bf16.msra.mxu0 0
        %830 = vmatpush.bf16.msra.mxu0 0
        %831 = vmatpush.bf16.msra.mxu0 0
        %832 = vmatpush.bf16.msra.mxu0 0
        %833 = vmatpush.bf16.msra.mxu0 %v714
        %834 = vmatmul.bf16.gmra.mxu0 %v824
        %v835 = vpop.f32.mrf.mxu0
        %v836 = vadd.f32 %v812, %v835
        %v837 = vpop.f32.mrf.mxu0
        %v838 = vadd.f32 %v816, %v837
        %839 = vdwg.mxu0
        %vm840 = vcmp.gt.f32.partialorder %v836, 0.0
        %vm841 = vcmp.gt.f32.partialorder %v838, 0.0
        %v842 = vmin.f32 %v836, 0.0
        %v843 = vmin.f32 %v838, 0.0
        %v844 = vmul.f32 %v842, 1.442695
        %v845 = vpow.pop %v844
        %v846 = vmul.f32 %v843, 1.442695
        %v847 = vpow.pop %v846
        %v848 = vsub.f32 %v845, 1.0
        %v849 = vsub.f32 %v847, 1.0
        %v850 = vsel %vm840, %v836, %v848
        %v851 = vsel %vm841, %v838, %v849
        %v852 = vadd.f32 %v850, %v805
        %v853 = vadd.f32 %v851, %v806
        %vm854 = vcmp.gt.f32.partialorder %v852, 0.0
        %vm855 = vcmp.gt.f32.partialorder %v853, 0.0
        %v856 = vmin.f32 %v852, 0.0
        %v857 = vmin.f32 %v853, 0.0
        %v858 = vmul.f32 %v856, 1.442695
        %v859 = vpow.pop %v858
        %v860 = vmul.f32 %v857, 1.442695
        %v861 = vpow.pop %v860
        %v862 = vsub.f32 %v859, 1.0
        %v863 = vsub.f32 %v861, 1.0
        %v864 = vsel %vm854, %v852, %v862
        %v865 = vsel %vm855, %v853, %v863
        %866 = vrot.lane.b32.xlu0 %v864, 3
        %v867 = vpop.permute.xlu0 %866
        %868 = vrot.lane.b32.xlu0 %v865, 3
        %v869 = vpop.permute.xlu0 %868
        %v870 = vsel %vm517, %v867, 0.0
        %v871 = vsel %vm517, %v869, 0.0
        %v872 = vpack.c.bf16 %v870, %v870
        %v873 = vpack.c.bf16 %v871, %v871
        %874 = vrot.lane.b32.xlu0 %v864, 2
        %v875 = vpop.permute.xlu0 %874
        %876 = vrot.lane.b32.xlu0 %v865, 2
        %v877 = vpop.permute.xlu0 %876
        %v878 = vsel %vm328, %v875, 0.0
        %v879 = vsel %vm328, %v877, 0.0
        %v880 = vpack.c.bf16 %v878, %v878
        %v881 = vpack.c.bf16 %v879, %v879
        %882 = vrot.lane.b32.xlu0 %v864, 1
        %v883 = vpop.permute.xlu0 %882
        %884 = vrot.lane.b32.xlu0 %v865, 1
        %v885 = vpop.permute.xlu0 %884
        %v886 = vsel %vm337, %v883, 0.0
        %v887 = vsel %vm337, %v885, 0.0
        %v888 = vpack.c.bf16 %v886, %v886
        %v889 = vpack.c.bf16 %v887, %v887
        %v890 = vpack.c.bf16 %v864, %v864
        %v891 = vpack.c.bf16 %v865, %v865
        %v894 = vunpack.c.l.b16 %v872
        %v895 = vunpack.c.l.b16 %v873
        %v896 = vpack.c.b16 %v895, %v894
        %v900 = vunpack.c.l.b16 %v880
        %v901 = vunpack.c.l.b16 %v881
        %v902 = vpack.c.b16 %v901, %v900
        %v906 = vunpack.c.l.b16 %v888
        %v907 = vunpack.c.l.b16 %v889
        %v908 = vpack.c.b16 %v907, %v906
        %v912 = vunpack.c.l.b16 %v890
        %v913 = vunpack.c.l.b16 %v891
        %v914 = vpack.c.b16 %v913, %v912
        %v916 = vld [vmem:[#allocation8] sm:$0xf]
        %v917 = vld [vmem:[#allocation8 + $0x4] sm:$0xf]
        %v918 = vld [vmem:[#allocation8 + $0x8] sm:$0xf]
        %v919 = vld [vmem:[#allocation8 + $0xc] sm:$0xf]
        %v920 = vld [vmem:[%s5] sm:$0xff]
        %v921 = vld [vmem:[%s5 + $0x8] sm:$0xff]
        %v922 = vld [vmem:[%s5 + $0x10] sm:$0xff]
        %v923 = vld [vmem:[%s5 + $0x18] sm:$0xff]
        %925 = vset.pattern.permute.xlu0 0
        %926 = vperm.xlu0 %925, %v920
        %v927 = vpop.permute.xlu0 %926
        %930 = vset.pattern.permute.xlu0 0
        %931 = vperm.xlu0 %930, %v921
        %v932 = vpop.permute.xlu0 %931
        %935 = vset.pattern.permute.xlu0 0
        %936 = vperm.xlu0 %935, %v922
        %v937 = vpop.permute.xlu0 %936
        %940 = vset.pattern.permute.xlu0 0
        %941 = vperm.xlu0 %940, %v923
        %v942 = vpop.permute.xlu0 %941
        %v948 = vunpack.c.l.b16 %v916
        %v949 = vunpack.c.l.b16 %v917
        %v950 = vunpack.c.l.b16 %v918
        %v951 = vunpack.c.l.b16 %v919
        %v952 = vpack.c.b16 %v949, %v948
        %v953 = vpack.c.b16 %v951, %v950
        %vm954 = vcmask 523264
        %v956 = vsel %vm954, %v952, 0
        %v959 = vsel %vm954, %v953, 0
        %961 = vmatpush.bf16.msra.mxu0 0
        %962 = vmatpush.bf16.msra.mxu0 0
        %963 = vmatpush.bf16.msra.mxu0 0
        %964 = vmatpush.bf16.msra.mxu0 0
        %965 = vmatpush.bf16.msra.mxu0 %v914
        %966 = vmatpush.bf16.msra.mxu0 %v908
        %967 = vmatpush.bf16.msra.mxu0 %v902
        %968 = vmatpush.bf16.msra.mxu0 %v896
        %969 = vmatmul.bf16.gmra.mxu0 %v956
        %v970 = vpop.f32.mrf.mxu0
        %v971 = vadd.f32 %v927, %v970
        %v972 = vpop.f32.mrf.mxu0
        %v973 = vadd.f32 %v932, %v972
        %974 = vmatmul.bf16.gmra.mxu0 %v959
        %v975 = vpop.f32.mrf.mxu0
        %v976 = vadd.f32 %v937, %v975
        %v977 = vpop.f32.mrf.mxu0
        %v978 = vadd.f32 %v942, %v977
        %979 = vdwg.mxu0
        %v980 = vlaneseq
        %v981 = vshrl.u32 %v980, 7
        %v982 = vadd.s32 %v981, 8
        %v983 = vadd.s32 %v981, 16
        %v984 = vadd.s32 %v981, 24
        %v985 = vadd.s32 %v981, 32
        %v986 = vadd.s32 %v981, 40
        %v987 = vadd.s32 %v981, 48
        %v988 = vadd.s32 %v981, 56
        %v989 = vadd.s32 %v981, 64
        %v990 = vadd.s32 %v981, 72
        %v991 = vadd.s32 %v981, 80
        %v992 = vadd.s32 %v981, 88
        %v993 = vadd.s32 %v981, 96
        %v994 = vadd.s32 %v981, 104
        %v995 = vadd.s32 %v981, 112
        %v996 = vadd.s32 %v981, 120
        %v997 = vmul.u32 %v319, 2
        %vm998 = vcmp.eq.s32.totalorder %v981, %v997
        %vm999 = vcmp.eq.s32.totalorder %v982, %v997
        %vm1000 = vcmp.eq.s32.totalorder %v983, %v997
        %vm1001 = vcmp.eq.s32.totalorder %v984, %v997
        %vm1002 = vcmp.eq.s32.totalorder %v985, %v997
        %vm1003 = vcmp.eq.s32.totalorder %v986, %v997
        %vm1004 = vcmp.eq.s32.totalorder %v987, %v997
        %vm1005 = vcmp.eq.s32.totalorder %v988, %v997
        %vm1006 = vcmp.eq.s32.totalorder %v989, %v997
        %vm1007 = vcmp.eq.s32.totalorder %v990, %v997
        %vm1008 = vcmp.eq.s32.totalorder %v991, %v997
        %vm1009 = vcmp.eq.s32.totalorder %v992, %v997
        %vm1010 = vcmp.eq.s32.totalorder %v993, %v997
        %vm1011 = vcmp.eq.s32.totalorder %v994, %v997
        %vm1012 = vcmp.eq.s32.totalorder %v995, %v997
        %vm1013 = vcmp.eq.s32.totalorder %v996, %v997
        %v1014 = vsel %vm998, 1, 0
        %v1015 = vsel %vm999, 1, 0
        %v1016 = vsel %vm1000, 1, 0
        %v1017 = vsel %vm1001, 1, 0
        %v1018 = vsel %vm1002, 1, 0
        %v1019 = vsel %vm1003, 1, 0
        %v1020 = vsel %vm1004, 1, 0
        %v1021 = vsel %vm1005, 1, 0
        %v1022 = vsel %vm1006, 1, 0
        %v1023 = vsel %vm1007, 1, 0
        %v1024 = vsel %vm1008, 1, 0
        %v1025 = vsel %vm1009, 1, 0
        %v1026 = vsel %vm1010, 1, 0
        %v1027 = vsel %vm1011, 1, 0
        %v1028 = vsel %vm1012, 1, 0
        %v1029 = vsel %vm1013, 1, 0
        %v1030 = vcvt.s32.f32 %v1014
        %v1031 = vcvt.s32.f32 %v1015
        %v1032 = vcvt.s32.f32 %v1016
        %v1033 = vcvt.s32.f32 %v1017
        %v1034 = vcvt.s32.f32 %v1018
        %v1035 = vcvt.s32.f32 %v1019
        %v1036 = vcvt.s32.f32 %v1020
        %v1037 = vcvt.s32.f32 %v1021
        %v1038 = vcvt.s32.f32 %v1022
        %v1039 = vcvt.s32.f32 %v1023
        %v1040 = vcvt.s32.f32 %v1024
        %v1041 = vcvt.s32.f32 %v1025
        %v1042 = vcvt.s32.f32 %v1026
        %v1043 = vcvt.s32.f32 %v1027
        %v1044 = vcvt.s32.f32 %v1028
        %v1045 = vcvt.s32.f32 %v1029
        %1046 = vmatpush.msra.mxu0 %v1045
        %1047 = vmatpush.msra.mxu0 %v1044
        %1048 = vmatpush.msra.mxu0 %v1043
        %1049 = vmatpush.msra.mxu0 %v1042
        %1050 = vmatpush.msra.mxu0 %v1041
        %1051 = vmatpush.msra.mxu0 %v1040
        %1052 = vmatpush.msra.mxu0 %v1039
        %1053 = vmatpush.msra.mxu0 %v1038
        %1054 = vmatpush.msra.mxu0 %v1037
        %1055 = vmatpush.msra.mxu0 %v1036
        %1056 = vmatpush.msra.mxu0 %v1035
        %1057 = vmatpush.msra.mxu0 %v1034
        %1058 = vmatpush.msra.mxu0 %v1033
        %1059 = vmatpush.msra.mxu0 %v1032
        %1060 = vmatpush.msra.mxu0 %v1031
        %1061 = vmatpush.msra.mxu0 %v1030
        %1062 = vmatmul.f32.gmra.mxu0 %v971
        %v1063 = vpop.f32.mrf.mxu0
        %v1064 = vadd.f32 0.0, %v1063
        %1065 = vmatmul.f32.gmra.mxu0 %v973
        %v1066 = vpop.f32.mrf.mxu0
        %v1067 = vadd.f32 0.0, %v1066
        %1068 = vmatmul.f32.gmra.mxu0 %v976
        %v1069 = vpop.f32.mrf.mxu0
        %v1070 = vadd.f32 0.0, %v1069
        %1071 = vmatmul.f32.gmra.mxu0 %v978
        %v1072 = vpop.f32.mrf.mxu0
        %v1073 = vadd.f32 0.0, %v1072
        %1074 = vdwg.mxu0
        %1075 = vst.msk [vmem:[%s311] sm:$0xff] %vm954, %v1064
        %1076 = vst.msk [vmem:[%s311 + $0x8] sm:$0xff] %vm954, %v1067
        %1077 = vst.msk [vmem:[%s311 + $0x10] sm:$0xff] %vm954, %v1070
        %1078 = vst.msk [vmem:[%s311 + $0x18] sm:$0xff] %vm954, %v1073
        %s1079 = sand.u32 %s162, 1
        %s1080 = scalar_lea.sflag [#allocation4], %s1079
        %s1081 = sand.u32 %s162, 1
        %s1082 = smul.addr %s1081, 32
        %s1083 = scalar_lea.vmem [#allocation10], %s1082
        // Predicated region
        $region61: #{tpu_custom_call.1} parent=43 // pred_check
          %p1084 = pneg %p172
        $region62: #{tpu_custom_call.1} parent=43 // pred_check_branch
          %1086 = sbr.rel (%p1084) target = $region64
        $region63: #{tpu_custom_call.1} parent=43 // pred_region
          %1088 = vsyncadd %s1080, 0
          %s1089 = smul.addr %s23, 4
          %s1090 = smul.addr %s1089, 8
          %s1091 = scalar_lea.hbm %s6, %s1090
          %s1092 = sshll.u32 %s1083, 4
          %s1093 = int_to_ptr.vmem [resolvable:$true] %s1092
          %s1094 = sshll.u32 %s1091, 4
          %s1095 = int_to_ptr.hbm [resolvable:$true] %s1094
          %1100 = dma.vmem_to_hbm [thread:$0]  %s1093, 512, %s1095, %s1080, 128, 128, 8
        $region64: #{tpu_custom_call.1} parent=43 // pred_fallthru
          _
      $region44: #{tpu_custom_call.1} parent=5 // pred_fallthru
        _
      %p1101 = scmp.le.s32.totalorder 2, %s18
      // Predicated region
      $region65: #{tpu_custom_call.1} parent=5 // pred_check
        %p1102 = pneg %p1101
      $region66: #{tpu_custom_call.1} parent=5 // pred_check_branch
        %1104 = sbr.rel (%p1102) target = $region68
      $region67: #{tpu_custom_call.1} parent=5 // pred_region
        %s1105 = ssub.s32 %s18, 2
        // Predicated region
        $region69: #{tpu_custom_call.1} parent=67 // pred_check
          %p1106 = pneg %p178
        $region70: #{tpu_custom_call.1} parent=67 // pred_check_branch
          %1108 = sbr.rel (%p1106) target = $region72
        $region71: #{tpu_custom_call.1} parent=67 // pred_region
          %s1109 = sand.u32 %s163, 1
          %s1110 = scalar_lea.sflag [#allocation4], %s1109
          %s1111 = sand.u32 %s163, 1
          %s1112 = smul.addr %s1111, 32
          %s1113 = scalar_lea.vmem [#allocation10], %s1112
          %1115 = dma.done %s1110, 512
        $region72: #{tpu_custom_call.1} parent=67 // pred_fallthru
          _
      $region68: #{tpu_custom_call.1} parent=5 // pred_fallthru
        _
    $region6: #{tpu_custom_call.1} parent=1 // loop_footer
      %s22 = sadd.s32 1, %s18
    $region7: #{tpu_custom_call.1} parent=1 // loop_footer_branch
      %17 = sbr.rel target = $region3
    $region8: #{tpu_custom_call.1} parent=1 // loop_exit
      _
    %1116 = vsyncpa [#allocation3], 1
    %s1117 = scalar_lea.sflag [#allocation3], 1
    %1118 = vsyncpa %s1117, 1
    %1119 = vsyncpa [#allocation6], 1
    %1120 = vsyncpa [#allocation9], 1
    %1121 = vsyncpa [#allocation4], 1
    %s1122 = scalar_lea.sflag [#allocation4], 1
    %1123 = vsyncpa %s1122, 1

</llo_original>
